<compile_context>
chip_gen: v6e
topology: v6e:2x2x1
jax: 0.10.0
libtpu: 0.0.40
codegen_flags: <defaults>
</compile_context>

<pallas_src>
import functools

import jax
import jax.numpy as jnp
from jax.experimental import pallas as pl
from jax.experimental.pallas import tpu as pltpu


# ----------------------------------------------------------------------------
# In-kernel helpers (operate on values already loaded from VMEM refs)
# ----------------------------------------------------------------------------
def _layernorm(x, g, b, eps=1e-6):
    # eps=1e-6 follows timm / MAE convention (torch default would be 1e-5).
    mu = jnp.mean(x, axis=-1, keepdims=True)
    var = jnp.mean(jnp.square(x - mu), axis=-1, keepdims=True)
    return (x - mu) * jax.lax.rsqrt(var + eps) * g + b


def _transformer_block(x, ln, wqkv, bqkv, wo, bo, w1, b1, w2, b2):
    """Pre-LN transformer block (single-head attention + GELU MLP).

    x: (B, T, dim) float32.  ln: (4, dim) = [ln1_g, ln1_b, ln2_g, ln2_b].
    wqkv: (dim, 3*dim) fused projection; bqkv: (3, dim) = [bq, bk, bv].
    """
    B, T, dim = x.shape
    ln1g, ln1b = ln[0:1], ln[1:2]
    ln2g, ln2b = ln[2:3], ln[3:4]

    # --- attention sub-block -------------------------------------------------
    h = _layernorm(x, ln1g, ln1b)                                   # (B, T, dim)
    qkv = jnp.dot(h.reshape(B * T, dim), wqkv,
                  preferred_element_type=jnp.float32)               # (B*T, 3dim)
    q = (qkv[:, 0 * dim:1 * dim] + bqkv[0:1]).reshape(B, T, dim)
    k = (qkv[:, 1 * dim:2 * dim] + bqkv[1:2]).reshape(B, T, dim)
    v = (qkv[:, 2 * dim:3 * dim] + bqkv[2:3]).reshape(B, T, dim)

    scale = 1.0 / (float(dim) ** 0.5)
    s = jnp.einsum('bnd,bmd->bnm', q, k,
                   preferred_element_type=jnp.float32) * scale      # (B, T, T)
    s = s - jnp.max(s, axis=-1, keepdims=True)
    p = jnp.exp(s)
    p = p * pl.reciprocal(jnp.sum(p, axis=-1, keepdims=True), approx=True)
    a = jnp.einsum('bnm,bmd->bnd', p, v,
                   preferred_element_type=jnp.float32)              # (B, T, dim)
    a = (jnp.dot(a.reshape(B * T, dim), wo,
                 preferred_element_type=jnp.float32) + bo).reshape(B, T, dim)
    x = x + a

    # --- MLP sub-block -------------------------------------------------------
    h2 = _layernorm(x, ln2g, ln2b)
    m = jnp.dot(h2.reshape(B * T, dim), w1,
                preferred_element_type=jnp.float32) + b1
    # TODO(synk): tanh-approx GELU; torch nn.GELU default is exact erf.
    m = jax.nn.gelu(m, approximate=True)
    m = jnp.dot(m, w2, preferred_element_type=jnp.float32) + b2
    return x + m.reshape(B, T, dim)


# ----------------------------------------------------------------------------
# Fused MAE kernel: encoder block -> enc-norm + decoder-embed ->
# mask-token fill / unshuffle -> decoder block -> dec-norm + prediction head.
# Single invocation (no grid); everything resident in VMEM.
# ----------------------------------------------------------------------------
def mae_fused_kernel(
    x_vis_ref, ids_ref,
    # encoder block
    e_ln, e_wqkv, e_bqkv, e_wo, e_bo, e_w1, e_b1, e_w2, e_b2,
    # encoder norm + decoder embed + mask token + decoder pos embed
    enc_norm, dec_embed_w, dec_embed_b, mask_token, dec_pos,
    # decoder block
    d_ln, d_wqkv, d_bqkv, d_wo, d_bo, d_w1, d_b1, d_w2, d_b2,
    # decoder norm + prediction head
    dec_norm, head_w, head_b,
    # output
    pred_ref,
):
    B, Nv, D = x_vis_ref.shape
    N = ids_ref.shape[1]
    Dd = mask_token.shape[1]

    # 1) encoder block on the visible tokens
    x = _transformer_block(
        x_vis_ref[...], e_ln[...], e_wqkv[...], e_bqkv[...],
        e_wo[...], e_bo[...], e_w1[...], e_b1[...], e_w2[...], e_b2[...])

    # 2) encoder norm + decoder embedding
    en = enc_norm[...]
    h = _layernorm(x, en[0:1], en[1:2])
    x_dec = (jnp.dot(h.reshape(B * Nv, D), dec_embed_w[...],
                     preferred_element_type=jnp.float32)
             + dec_embed_b[...]).reshape(B, Nv, Dd)

    # 3) mask-token fill + unshuffle via one-hot gather, then decoder pos-embed
    ids = ids_ref[...]                                               # (B, N) i32
    iota_v = jax.lax.broadcasted_iota(jnp.int32, (B, N, Nv), 2)
    sel = (ids[:, :, None] == iota_v).astype(jnp.float32)            # (B, N, Nv)
    x_gather = jnp.einsum('bnv,bvd->bnd', sel, x_dec,
                          preferred_element_type=jnp.float32)        # (B, N, Dd)
    is_masked = (ids >= Nv).astype(jnp.float32)[:, :, None]
    x_full = x_gather + is_masked * mask_token[...]
    x_full = x_full + dec_pos[...]

    # 4) decoder block on the full (unshuffled) sequence
    x_full = _transformer_block(
        x_full, d_ln[...], d_wqkv[...], d_bqkv[...],
        d_wo[...], d_bo[...], d_w1[...], d_b1[...], d_w2[...], d_b2[...])

    # 5) decoder norm + prediction head (only HBM write of the whole kernel)
    dn = dec_norm[...]
    h2 = _layernorm(x_full, dn[0:1], dn[1:2])
    pred = (jnp.dot(h2.reshape(B * N, Dd), head_w[...],
                    preferred_element_type=jnp.float32)
            + head_b[...]).reshape(B, N, D)
    pred_ref[...] = pred


# ----------------------------------------------------------------------------
# pallas_call wrapper
# ----------------------------------------------------------------------------
_BLOCK_KEYS = ("ln", "wqkv", "bqkv", "wo", "bo", "w1", "b1", "w2", "b2")


def _cost_estimate(B, Nv, N, D, Dd, args):
    """Advisory cost hint for XLA scheduling around the fused custom call."""
    H, Hd = 4 * D, 4 * Dd

    def blk_flops(rows, ctx, dim, hid):
        return (2 * rows * dim * 3 * dim            # fused qkv
                + 2 * 2 * B * ctx * ctx * dim       # scores + p@v
                + 2 * rows * dim * dim              # output proj
                + 2 * 2 * rows * dim * hid)         # mlp

    flops = (blk_flops(B * Nv, Nv, D, H)
             + blk_flops(B * N, N, Dd, Hd)
             + 2 * B * Nv * D * Dd                  # decoder embed
             + 2 * B * N * Nv * Dd                  # one-hot gather matmul
             + 2 * B * N * Dd * D)                  # prediction head
    transcendentals = B * Nv * (Nv + H) + B * N * (N + Hd)
    bytes_accessed = (sum(int(a.size) * a.dtype.itemsize for a in args)
                      + B * N * D * 4)
    return pl.CostEstimate(flops=int(flops),
                           transcendentals=int(transcendentals),
                           bytes_accessed=int(bytes_accessed))


def mae_fused_forward(x_vis, ids_restore, params):
    B, Nv, D = x_vis.shape
    N = ids_restore.shape[1]
    Dd = params["mask_token"].shape[-1]

    enc = [params["enc_block"][k] for k in _BLOCK_KEYS]
    dec = [params["dec_block"][k] for k in _BLOCK_KEYS]
    args = ([x_vis, ids_restore.astype(jnp.int32)]
            + enc
            + [params["enc_norm"], params["dec_embed_w"], params["dec_embed_b"],
               params["mask_token"], params["dec_pos_embed"]]
            + dec
            + [params["dec_norm"], params["head_w"], params["head_b"]])

    vmem_spec = pl.BlockSpec(memory_space=pltpu.MemorySpace.VMEM)
    return pl.pallas_call(
        mae_fused_kernel,
        out_shape=jax.ShapeDtypeStruct((B, N, D), jnp.float32),
        in_specs=[vmem_spec] * len(args),
        out_specs=vmem_spec,
        cost_estimate=_cost_estimate(B, Nv, N, D, Dd, args),
    )(*args)


# ----------------------------------------------------------------------------
# Parameter init (deterministic, in-script), with packed QKV / LN params
# ----------------------------------------------------------------------------
def init_params(key, *, N, D, Dd, mlp_ratio=4):
    keys = iter(jax.random.split(key, 32))

    def nrm(shape, scale=0.02):
        return (scale * jax.random.normal(next(keys), shape)).astype(jnp.float32)

    def block_params(dim):
        h = dim * mlp_ratio
        ln = jnp.concatenate(
            [jnp.ones((1, dim)), jnp.zeros((1, dim)),
             jnp.ones((1, dim)), jnp.zeros((1, dim))], axis=0)
        return dict(
            ln=ln.astype(jnp.float32),                 # [ln1g, ln1b, ln2g, ln2b]
            wqkv=nrm((dim, 3 * dim)),
            bqkv=jnp.zeros((3, dim), jnp.float32),     # [bq, bk, bv]
            wo=nrm((dim, dim)), bo=jnp.zeros((1, dim), jnp.float32),
            w1=nrm((dim, h)), b1=jnp.zeros((1, h), jnp.float32),
            w2=nrm((h, dim)), b2=jnp.zeros((1, dim), jnp.float32),
        )

    return dict(
        pos_embed=nrm((1, N, D)),
        enc_block=block_params(D),
        enc_norm=jnp.concatenate([jnp.ones((1, D)), jnp.zeros((1, D))],
                                 axis=0).astype(jnp.float32),
        dec_embed_w=nrm((D, Dd)),
        dec_embed_b=jnp.zeros((1, Dd), jnp.float32),
        mask_token=nrm((1, Dd)),
        dec_pos_embed=nrm((N, Dd)),
        dec_block=block_params(Dd),
        dec_norm=jnp.concatenate([jnp.ones((1, Dd)), jnp.zeros((1, Dd))],
                                 axis=0).astype(jnp.float32),
        head_w=nrm((Dd, D)),
        head_b=jnp.zeros((1, D), jnp.float32),
    )


# ----------------------------------------------------------------------------
# Forward pass: masking glue in plain JAX, everything else in the fused kernel
# ----------------------------------------------------------------------------
def random_masking(x, mask_ratio, key):
    # TODO(synk): argsort-based random shuffle has no clean Pallas equivalent;
    # it stays in XLA glue (tiny) and the kernel consumes ids_restore.
    B, N, _ = x.shape
    len_keep = int(N * (1 - mask_ratio))
    noise = jax.random.uniform(key, (B, N))
    ids_shuffle = jnp.argsort(noise, axis=1)
    ids_restore = jnp.argsort(ids_shuffle, axis=1).astype(jnp.int32)
    ids_keep = ids_shuffle[:, :len_keep]
    x_masked = jnp.take_along_axis(x, ids_keep[:, :, None], axis=1)
    mask = jnp.ones((B, N), jnp.float32).at[:, :len_keep].set(0.0)
    mask = jnp.take_along_axis(mask, ids_restore, axis=1)
    return x_masked, mask, ids_restore


@functools.partial(jax.jit, static_argnames=("mask_ratio",))
def temporal_mae_forward(x, params, mask_key, mask_ratio=0.5):
    """x: [B, N, D] latent embeddings. Returns (pred [B, N, D], mask [B, N])."""
    x = x + params["pos_embed"]
    x_vis, mask, ids_restore = random_masking(x, mask_ratio, mask_key)
    pred = mae_fused_forward(x_vis, ids_restore, params)
    return pred, mask


# ----------------------------------------------------------------------------
if __name__ == "__main__":
    B, N, D, Dd = 2, 8, 32, 16
    root = jax.random.PRNGKey(0)
    kx, kp, km = jax.random.split(root, 3)

    x = jax.random.normal(kx, (B, N, D), jnp.float32)
    params = init_params(kp, N=N, D=D, Dd=Dd)

    pred, mask = temporal_mae_forward(x, params, km, mask_ratio=0.5)
    pred = jax.block_until_ready(pred)
    mask = jax.block_until_ready(mask)

    assert pred.shape == (B, N, D) and pred.dtype == jnp.float32
    assert mask.shape == (B, N)
    assert bool(jnp.all(jnp.isfinite(pred)))
    print("KERNEL_OK")
</pallas_src>

<mosaic_0001>
module attributes {stable_mosaic.version = 11 : i64} {
  func.func @mae_fused_kernel(%arg0: memref<2x4x32xf32, #tpu.memory_space<vmem>>, %arg1: memref<2x8xi32, #tpu.memory_space<vmem>>, %arg2: memref<4x32xf32, #tpu.memory_space<vmem>>, %arg3: memref<32x96xf32, #tpu.memory_space<vmem>>, %arg4: memref<3x32xf32, #tpu.memory_space<vmem>>, %arg5: memref<32x32xf32, #tpu.memory_space<vmem>>, %arg6: memref<1x32xf32, #tpu.memory_space<vmem>>, %arg7: memref<32x128xf32, #tpu.memory_space<vmem>>, %arg8: memref<1x128xf32, #tpu.memory_space<vmem>>, %arg9: memref<128x32xf32, #tpu.memory_space<vmem>>, %arg10: memref<1x32xf32, #tpu.memory_space<vmem>>, %arg11: memref<2x32xf32, #tpu.memory_space<vmem>>, %arg12: memref<32x16xf32, #tpu.memory_space<vmem>>, %arg13: memref<1x16xf32, #tpu.memory_space<vmem>>, %arg14: memref<1x16xf32, #tpu.memory_space<vmem>>, %arg15: memref<8x16xf32, #tpu.memory_space<vmem>>, %arg16: memref<4x16xf32, #tpu.memory_space<vmem>>, %arg17: memref<16x48xf32, #tpu.memory_space<vmem>>, %arg18: memref<3x16xf32, #tpu.memory_space<vmem>>, %arg19: memref<16x16xf32, #tpu.memory_space<vmem>>, %arg20: memref<1x16xf32, #tpu.memory_space<vmem>>, %arg21: memref<16x64xf32, #tpu.memory_space<vmem>>, %arg22: memref<1x64xf32, #tpu.memory_space<vmem>>, %arg23: memref<64x16xf32, #tpu.memory_space<vmem>>, %arg24: memref<1x16xf32, #tpu.memory_space<vmem>>, %arg25: memref<2x16xf32, #tpu.memory_space<vmem>>, %arg26: memref<16x32xf32, #tpu.memory_space<vmem>>, %arg27: memref<1x32xf32, #tpu.memory_space<vmem>>, %arg28: memref<2x8x32xf32, #tpu.memory_space<vmem>>) attributes {dimension_semantics = [], scalar_prefetch = 0 : i64, scratch_operands = 0 : i64, tpu.core_type = #tpu.core_type<tc>} {
    %c0 = arith.constant 0 : index
    %c0_0 = arith.constant 0 : index
    %c0_1 = arith.constant 0 : index
    %0 = vector.load %arg0[%c0, %c0_0, %c0_1] : memref<2x4x32xf32, #tpu.memory_space<vmem>>, vector<2x4x32xf32>
    %c0_2 = arith.constant 0 : index
    %c0_3 = arith.constant 0 : index
    %1 = vector.load %arg2[%c0_2, %c0_3] : memref<4x32xf32, #tpu.memory_space<vmem>>, vector<4x32xf32>
    %c0_4 = arith.constant 0 : index
    %c0_5 = arith.constant 0 : index
    %2 = vector.load %arg3[%c0_4, %c0_5] : memref<32x96xf32, #tpu.memory_space<vmem>>, vector<32x96xf32>
    %c0_6 = arith.constant 0 : index
    %c0_7 = arith.constant 0 : index
    %3 = vector.load %arg4[%c0_6, %c0_7] : memref<3x32xf32, #tpu.memory_space<vmem>>, vector<3x32xf32>
    %c0_8 = arith.constant 0 : index
    %c0_9 = arith.constant 0 : index
    %4 = vector.load %arg5[%c0_8, %c0_9] : memref<32x32xf32, #tpu.memory_space<vmem>>, vector<32x32xf32>
    %c0_10 = arith.constant 0 : index
    %c0_11 = arith.constant 0 : index
    %5 = vector.load %arg6[%c0_10, %c0_11] : memref<1x32xf32, #tpu.memory_space<vmem>>, vector<1x32xf32>
    %c0_12 = arith.constant 0 : index
    %c0_13 = arith.constant 0 : index
    %6 = vector.load %arg7[%c0_12, %c0_13] : memref<32x128xf32, #tpu.memory_space<vmem>>, vector<32x128xf32>
    %c0_14 = arith.constant 0 : index
    %c0_15 = arith.constant 0 : index
    %7 = vector.load %arg8[%c0_14, %c0_15] : memref<1x128xf32, #tpu.memory_space<vmem>>, vector<1x128xf32>
    %c0_16 = arith.constant 0 : index
    %c0_17 = arith.constant 0 : index
    %8 = vector.load %arg9[%c0_16, %c0_17] : memref<128x32xf32, #tpu.memory_space<vmem>>, vector<128x32xf32>
    %c0_18 = arith.constant 0 : index
    %c0_19 = arith.constant 0 : index
    %9 = vector.load %arg10[%c0_18, %c0_19] : memref<1x32xf32, #tpu.memory_space<vmem>>, vector<1x32xf32>
    %10 = vector.extract_strided_slice %1 {offsets = [0, 0], sizes = [1, 32], strides = [1, 1]} : vector<4x32xf32> to vector<1x32xf32>
    %11 = vector.extract_strided_slice %1 {offsets = [1, 0], sizes = [1, 32], strides = [1, 1]} : vector<4x32xf32> to vector<1x32xf32>
    %12 = vector.extract_strided_slice %1 {offsets = [2, 0], sizes = [1, 32], strides = [1, 1]} : vector<4x32xf32> to vector<1x32xf32>
    %13 = vector.extract_strided_slice %1 {offsets = [3, 0], sizes = [1, 32], strides = [1, 1]} : vector<4x32xf32> to vector<1x32xf32>
    %cst = arith.constant dense<0.000000e+00> : vector<2x4xf32>
    %14 = vector.multi_reduction <add>, %0, %cst [2] : vector<2x4x32xf32> to vector<2x4xf32>
    %15 = vector.shape_cast %14 : vector<2x4xf32> to vector<2x4x1xf32>
    %cst_20 = arith.constant 3.200000e+01 : f32
    %16 = vector.broadcast %cst_20 : f32 to vector<2x4x1xf32>
    %17 = arith.divf %15, %16 : vector<2x4x1xf32>
    %18 = vector.broadcast %17 : vector<2x4x1xf32> to vector<2x4x32xf32>
    %19 = arith.subf %0, %18 : vector<2x4x32xf32>
    %20 = arith.mulf %19, %19 : vector<2x4x32xf32>
    %cst_21 = arith.constant dense<0.000000e+00> : vector<2x4xf32>
    %21 = vector.multi_reduction <add>, %20, %cst_21 [2] : vector<2x4x32xf32> to vector<2x4xf32>
    %22 = vector.shape_cast %21 : vector<2x4xf32> to vector<2x4x1xf32>
    %cst_22 = arith.constant 3.200000e+01 : f32
    %23 = vector.broadcast %cst_22 : f32 to vector<2x4x1xf32>
    %24 = arith.divf %22, %23 : vector<2x4x1xf32>
    %25 = vector.broadcast %17 : vector<2x4x1xf32> to vector<2x4x32xf32>
    %26 = arith.subf %0, %25 : vector<2x4x32xf32>
    %cst_23 = arith.constant 9.99999997E-7 : f32
    %27 = vector.broadcast %cst_23 : f32 to vector<2x4x1xf32>
    %28 = arith.addf %24, %27 : vector<2x4x1xf32>
    %29 = math.rsqrt %28 : vector<2x4x1xf32>
    %30 = vector.broadcast %29 : vector<2x4x1xf32> to vector<2x4x32xf32>
    %31 = arith.mulf %26, %30 : vector<2x4x32xf32>
    %32 = vector.shape_cast %10 : vector<1x32xf32> to vector<1x1x32xf32>
    %33 = vector.broadcast %32 : vector<1x1x32xf32> to vector<2x4x32xf32>
    %34 = arith.mulf %31, %33 : vector<2x4x32xf32>
    %35 = vector.shape_cast %11 : vector<1x32xf32> to vector<1x1x32xf32>
    %36 = vector.broadcast %35 : vector<1x1x32xf32> to vector<2x4x32xf32>
    %37 = arith.addf %34, %36 : vector<2x4x32xf32>
    %38 = vector.shape_cast %37 : vector<2x4x32xf32> to vector<8x32xf32>
    %cst_24 = arith.constant dense<0.000000e+00> : vector<8x96xf32>
    %39 = tpu.matmul %38, %2, %cst_24 {dimension_numbers = #tpu.dot_dimension_numbers<[1], [0], [0], [1], [0, 0, 1, 1], [], []>} : vector<8x32xf32>, vector<32x96xf32>, vector<8x96xf32> -> vector<8x96xf32>
    %40 = vector.extract_strided_slice %39 {offsets = [0, 0], sizes = [8, 32], strides = [1, 1]} : vector<8x96xf32> to vector<8x32xf32>
    %41 = vector.extract_strided_slice %3 {offsets = [0, 0], sizes = [1, 32], strides = [1, 1]} : vector<3x32xf32> to vector<1x32xf32>
    %42 = vector.broadcast %41 : vector<1x32xf32> to vector<8x32xf32>
    %43 = arith.addf %40, %42 : vector<8x32xf32>
    %44 = vector.shape_cast %43 : vector<8x32xf32> to vector<2x4x32xf32>
    %45 = vector.extract_strided_slice %39 {offsets = [0, 32], sizes = [8, 32], strides = [1, 1]} : vector<8x96xf32> to vector<8x32xf32>
    %46 = vector.extract_strided_slice %3 {offsets = [1, 0], sizes = [1, 32], strides = [1, 1]} : vector<3x32xf32> to vector<1x32xf32>
    %47 = vector.broadcast %46 : vector<1x32xf32> to vector<8x32xf32>
    %48 = arith.addf %45, %47 : vector<8x32xf32>
    %49 = vector.shape_cast %48 : vector<8x32xf32> to vector<2x4x32xf32>
    %50 = vector.extract_strided_slice %39 {offsets = [0, 64], sizes = [8, 32], strides = [1, 1]} : vector<8x96xf32> to vector<8x32xf32>
    %51 = vector.extract_strided_slice %3 {offsets = [2, 0], sizes = [1, 32], strides = [1, 1]} : vector<3x32xf32> to vector<1x32xf32>
    %52 = vector.broadcast %51 : vector<1x32xf32> to vector<8x32xf32>
    %53 = arith.addf %50, %52 : vector<8x32xf32>
    %54 = vector.shape_cast %53 : vector<8x32xf32> to vector<2x4x32xf32>
    "tpu.trace_start"() <{level = 10 : i32, message = "bnd,bmd->bnm"}> : () -> ()
    %cst_25 = arith.constant dense<0.000000e+00> : vector<2x4x4xf32>
    %55 = tpu.matmul %44, %49, %cst_25 {dimension_numbers = #tpu.dot_dimension_numbers<[2], [2], [1], [1], [0, 0, 0, 1, 1, 1], [0], [0]>} : vector<2x4x32xf32>, vector<2x4x32xf32>, vector<2x4x4xf32> -> vector<2x4x4xf32>
    "tpu.trace_stop"() : () -> ()
    %cst_26 = arith.constant 0.176776692 : f32
    %56 = vector.broadcast %cst_26 : f32 to vector<2x4x4xf32>
    %57 = arith.mulf %55, %56 : vector<2x4x4xf32>
    %cst_27 = arith.constant dense<0xFF800000> : vector<2x4xf32>
    %58 = vector.multi_reduction <maximumf>, %57, %cst_27 [2] : vector<2x4x4xf32> to vector<2x4xf32>
    %59 = vector.shape_cast %58 : vector<2x4xf32> to vector<2x4x1xf32>
    %60 = vector.broadcast %59 : vector<2x4x1xf32> to vector<2x4x4xf32>
    %61 = arith.subf %57, %60 : vector<2x4x4xf32>
    %62 = math.exp %61 : vector<2x4x4xf32>
    %cst_28 = arith.constant dense<0.000000e+00> : vector<2x4xf32>
    %63 = vector.multi_reduction <add>, %62, %cst_28 [2] : vector<2x4x4xf32> to vector<2x4xf32>
    %64 = vector.shape_cast %63 : vector<2x4xf32> to vector<2x4x1xf32>
    %65 = tpu.reciprocal %64 {approx = true} : vector<2x4x1xf32> -> vector<2x4x1xf32>
    %66 = vector.broadcast %65 : vector<2x4x1xf32> to vector<2x4x4xf32>
    %67 = arith.mulf %62, %66 : vector<2x4x4xf32>
    "tpu.trace_start"() <{level = 10 : i32, message = "bnm,bmd->bnd"}> : () -> ()
    %cst_29 = arith.constant dense<0.000000e+00> : vector<2x4x32xf32>
    %68 = tpu.matmul %67, %54, %cst_29 {dimension_numbers = #tpu.dot_dimension_numbers<[2], [1], [1], [2], [0, 0, 0, 1, 1, 2], [0], [0]>} : vector<2x4x4xf32>, vector<2x4x32xf32>, vector<2x4x32xf32> -> vector<2x4x32xf32>
    "tpu.trace_stop"() : () -> ()
    %69 = vector.shape_cast %68 : vector<2x4x32xf32> to vector<8x32xf32>
    %cst_30 = arith.constant dense<0.000000e+00> : vector<8x32xf32>
    %70 = tpu.matmul %69, %4, %cst_30 {dimension_numbers = #tpu.dot_dimension_numbers<[1], [0], [0], [1], [0, 0, 1, 1], [], []>} : vector<8x32xf32>, vector<32x32xf32>, vector<8x32xf32> -> vector<8x32xf32>
    %71 = vector.broadcast %5 : vector<1x32xf32> to vector<8x32xf32>
    %72 = arith.addf %70, %71 : vector<8x32xf32>
    %73 = vector.shape_cast %72 : vector<8x32xf32> to vector<2x4x32xf32>
    %74 = arith.addf %0, %73 : vector<2x4x32xf32>
    %cst_31 = arith.constant dense<0.000000e+00> : vector<2x4xf32>
    %75 = vector.multi_reduction <add>, %74, %cst_31 [2] : vector<2x4x32xf32> to vector<2x4xf32>
    %76 = vector.shape_cast %75 : vector<2x4xf32> to vector<2x4x1xf32>
    %cst_32 = arith.constant 3.200000e+01 : f32
    %77 = vector.broadcast %cst_32 : f32 to vector<2x4x1xf32>
    %78 = arith.divf %76, %77 : vector<2x4x1xf32>
    %79 = vector.broadcast %78 : vector<2x4x1xf32> to vector<2x4x32xf32>
    %80 = arith.subf %74, %79 : vector<2x4x32xf32>
    %81 = arith.mulf %80, %80 : vector<2x4x32xf32>
    %cst_33 = arith.constant dense<0.000000e+00> : vector<2x4xf32>
    %82 = vector.multi_reduction <add>, %81, %cst_33 [2] : vector<2x4x32xf32> to vector<2x4xf32>
    %83 = vector.shape_cast %82 : vector<2x4xf32> to vector<2x4x1xf32>
    %cst_34 = arith.constant 3.200000e+01 : f32
    %84 = vector.broadcast %cst_34 : f32 to vector<2x4x1xf32>
    %85 = arith.divf %83, %84 : vector<2x4x1xf32>
    %86 = vector.broadcast %78 : vector<2x4x1xf32> to vector<2x4x32xf32>
    %87 = arith.subf %74, %86 : vector<2x4x32xf32>
    %cst_35 = arith.constant 9.99999997E-7 : f32
    %88 = vector.broadcast %cst_35 : f32 to vector<2x4x1xf32>
    %89 = arith.addf %85, %88 : vector<2x4x1xf32>
    %90 = math.rsqrt %89 : vector<2x4x1xf32>
    %91 = vector.broadcast %90 : vector<2x4x1xf32> to vector<2x4x32xf32>
    %92 = arith.mulf %87, %91 : vector<2x4x32xf32>
    %93 = vector.shape_cast %12 : vector<1x32xf32> to vector<1x1x32xf32>
    %94 = vector.broadcast %93 : vector<1x1x32xf32> to vector<2x4x32xf32>
    %95 = arith.mulf %92, %94 : vector<2x4x32xf32>
    %96 = vector.shape_cast %13 : vector<1x32xf32> to vector<1x1x32xf32>
    %97 = vector.broadcast %96 : vector<1x1x32xf32> to vector<2x4x32xf32>
    %98 = arith.addf %95, %97 : vector<2x4x32xf32>
    %99 = vector.shape_cast %98 : vector<2x4x32xf32> to vector<8x32xf32>
    %cst_36 = arith.constant dense<0.000000e+00> : vector<8x128xf32>
    %100 = tpu.matmul %99, %6, %cst_36 {dimension_numbers = #tpu.dot_dimension_numbers<[1], [0], [0], [1], [0, 0, 1, 1], [], []>} : vector<8x32xf32>, vector<32x128xf32>, vector<8x128xf32> -> vector<8x128xf32>
    %101 = vector.broadcast %7 : vector<1x128xf32> to vector<8x128xf32>
    %102 = arith.addf %100, %101 : vector<8x128xf32>
    %103 = arith.mulf %102, %102 : vector<8x128xf32>
    %104 = arith.mulf %102, %103 : vector<8x128xf32>
    %cst_37 = arith.constant 4.471500e-02 : f32
    %105 = vector.broadcast %cst_37 : f32 to vector<8x128xf32>
    %106 = arith.mulf %105, %104 : vector<8x128xf32>
    %107 = arith.addf %102, %106 : vector<8x128xf32>
    %cst_38 = arith.constant 0.797884583 : f32
    %108 = vector.broadcast %cst_38 : f32 to vector<8x128xf32>
    %109 = arith.mulf %108, %107 : vector<8x128xf32>
    %110 = math.tanh %109 : vector<8x128xf32>
    %cst_39 = arith.constant 1.000000e+00 : f32
    %111 = vector.broadcast %cst_39 : f32 to vector<8x128xf32>
    %112 = arith.addf %111, %110 : vector<8x128xf32>
    %cst_40 = arith.constant 5.000000e-01 : f32
    %113 = vector.broadcast %cst_40 : f32 to vector<8x128xf32>
    %114 = arith.mulf %113, %112 : vector<8x128xf32>
    %115 = arith.mulf %102, %114 : vector<8x128xf32>
    %cst_41 = arith.constant dense<0.000000e+00> : vector<8x32xf32>
    %116 = tpu.matmul %115, %8, %cst_41 {dimension_numbers = #tpu.dot_dimension_numbers<[1], [0], [0], [1], [0, 0, 1, 1], [], []>} : vector<8x128xf32>, vector<128x32xf32>, vector<8x32xf32> -> vector<8x32xf32>
    %117 = vector.broadcast %9 : vector<1x32xf32> to vector<8x32xf32>
    %118 = arith.addf %116, %117 : vector<8x32xf32>
    %119 = vector.shape_cast %118 : vector<8x32xf32> to vector<2x4x32xf32>
    %120 = arith.addf %74, %119 : vector<2x4x32xf32>
    %c0_42 = arith.constant 0 : index
    %c0_43 = arith.constant 0 : index
    %121 = vector.load %arg11[%c0_42, %c0_43] : memref<2x32xf32, #tpu.memory_space<vmem>>, vector<2x32xf32>
    %122 = vector.extract_strided_slice %121 {offsets = [0, 0], sizes = [1, 32], strides = [1, 1]} : vector<2x32xf32> to vector<1x32xf32>
    %123 = vector.extract_strided_slice %121 {offsets = [1, 0], sizes = [1, 32], strides = [1, 1]} : vector<2x32xf32> to vector<1x32xf32>
    %cst_44 = arith.constant dense<0.000000e+00> : vector<2x4xf32>
    %124 = vector.multi_reduction <add>, %120, %cst_44 [2] : vector<2x4x32xf32> to vector<2x4xf32>
    %125 = vector.shape_cast %124 : vector<2x4xf32> to vector<2x4x1xf32>
    %cst_45 = arith.constant 3.200000e+01 : f32
    %126 = vector.broadcast %cst_45 : f32 to vector<2x4x1xf32>
    %127 = arith.divf %125, %126 : vector<2x4x1xf32>
    %128 = vector.broadcast %127 : vector<2x4x1xf32> to vector<2x4x32xf32>
    %129 = arith.subf %120, %128 : vector<2x4x32xf32>
    %130 = arith.mulf %129, %129 : vector<2x4x32xf32>
    %cst_46 = arith.constant dense<0.000000e+00> : vector<2x4xf32>
    %131 = vector.multi_reduction <add>, %130, %cst_46 [2] : vector<2x4x32xf32> to vector<2x4xf32>
    %132 = vector.shape_cast %131 : vector<2x4xf32> to vector<2x4x1xf32>
    %cst_47 = arith.constant 3.200000e+01 : f32
    %133 = vector.broadcast %cst_47 : f32 to vector<2x4x1xf32>
    %134 = arith.divf %132, %133 : vector<2x4x1xf32>
    %135 = vector.broadcast %127 : vector<2x4x1xf32> to vector<2x4x32xf32>
    %136 = arith.subf %120, %135 : vector<2x4x32xf32>
    %cst_48 = arith.constant 9.99999997E-7 : f32
    %137 = vector.broadcast %cst_48 : f32 to vector<2x4x1xf32>
    %138 = arith.addf %134, %137 : vector<2x4x1xf32>
    %139 = math.rsqrt %138 : vector<2x4x1xf32>
    %140 = vector.broadcast %139 : vector<2x4x1xf32> to vector<2x4x32xf32>
    %141 = arith.mulf %136, %140 : vector<2x4x32xf32>
    %142 = vector.shape_cast %122 : vector<1x32xf32> to vector<1x1x32xf32>
    %143 = vector.broadcast %142 : vector<1x1x32xf32> to vector<2x4x32xf32>
    %144 = arith.mulf %141, %143 : vector<2x4x32xf32>
    %145 = vector.shape_cast %123 : vector<1x32xf32> to vector<1x1x32xf32>
    %146 = vector.broadcast %145 : vector<1x1x32xf32> to vector<2x4x32xf32>
    %147 = arith.addf %144, %146 : vector<2x4x32xf32>
    %148 = vector.shape_cast %147 : vector<2x4x32xf32> to vector<8x32xf32>
    %c0_49 = arith.constant 0 : index
    %c0_50 = arith.constant 0 : index
    %149 = vector.load %arg12[%c0_49, %c0_50] : memref<32x16xf32, #tpu.memory_space<vmem>>, vector<32x16xf32>
    %cst_51 = arith.constant dense<0.000000e+00> : vector<8x16xf32>
    %150 = tpu.matmul %148, %149, %cst_51 {dimension_numbers = #tpu.dot_dimension_numbers<[1], [0], [0], [1], [0, 0, 1, 1], [], []>} : vector<8x32xf32>, vector<32x16xf32>, vector<8x16xf32> -> vector<8x16xf32>
    %c0_52 = arith.constant 0 : index
    %c0_53 = arith.constant 0 : index
    %151 = vector.load %arg13[%c0_52, %c0_53] : memref<1x16xf32, #tpu.memory_space<vmem>>, vector<1x16xf32>
    %152 = vector.broadcast %151 : vector<1x16xf32> to vector<8x16xf32>
    %153 = arith.addf %150, %152 : vector<8x16xf32>
    %154 = vector.shape_cast %153 : vector<8x16xf32> to vector<2x4x16xf32>
    %c0_54 = arith.constant 0 : index
    %c0_55 = arith.constant 0 : index
    %155 = vector.load %arg1[%c0_54, %c0_55] : memref<2x8xi32, #tpu.memory_space<vmem>>, vector<2x8xi32>
    %156 = tpu.iota {dimensions = array<i32: 2>} : vector<2x8x4xi32>
    %157 = vector.shape_cast %155 : vector<2x8xi32> to vector<2x8x1xi32>
    %158 = vector.broadcast %157 : vector<2x8x1xi32> to vector<2x8x4xi32>
    %159 = arith.cmpi eq, %158, %156 : vector<2x8x4xi32>
    %160 = arith.extui %159 : vector<2x8x4xi1> to vector<2x8x4xi32>
    %161 = arith.sitofp %160 : vector<2x8x4xi32> to vector<2x8x4xf32>
    "tpu.trace_start"() <{level = 10 : i32, message = "bnv,bvd->bnd"}> : () -> ()
    %cst_56 = arith.constant dense<0.000000e+00> : vector<2x8x16xf32>
    %162 = tpu.matmul %161, %154, %cst_56 {dimension_numbers = #tpu.dot_dimension_numbers<[2], [1], [1], [2], [0, 0, 0, 1, 1, 2], [0], [0]>} : vector<2x8x4xf32>, vector<2x4x16xf32>, vector<2x8x16xf32> -> vector<2x8x16xf32>
    %c4_i32 = arith.constant 4 : i32
    "tpu.trace_stop"() : () -> ()
    %163 = vector.broadcast %c4_i32 : i32 to vector<2x8xi32>
    %164 = arith.cmpi sge, %155, %163 : vector<2x8xi32>
    %165 = arith.extui %164 : vector<2x8xi1> to vector<2x8xi32>
    %166 = arith.sitofp %165 : vector<2x8xi32> to vector<2x8xf32>
    %167 = vector.shape_cast %166 : vector<2x8xf32> to vector<2x8x1xf32>
    %c0_57 = arith.constant 0 : index
    %c0_58 = arith.constant 0 : index
    %168 = vector.load %arg14[%c0_57, %c0_58] : memref<1x16xf32, #tpu.memory_space<vmem>>, vector<1x16xf32>
    %169 = vector.shape_cast %168 : vector<1x16xf32> to vector<1x1x16xf32>
    %170 = vector.broadcast %167 : vector<2x8x1xf32> to vector<2x8x16xf32>
    %171 = vector.broadcast %169 : vector<1x1x16xf32> to vector<2x8x16xf32>
    %172 = arith.mulf %170, %171 : vector<2x8x16xf32>
    %173 = arith.addf %162, %172 : vector<2x8x16xf32>
    %c0_59 = arith.constant 0 : index
    %c0_60 = arith.constant 0 : index
    %174 = vector.load %arg15[%c0_59, %c0_60] : memref<8x16xf32, #tpu.memory_space<vmem>>, vector<8x16xf32>
    %175 = vector.shape_cast %174 : vector<8x16xf32> to vector<1x8x16xf32>
    %176 = vector.broadcast %175 : vector<1x8x16xf32> to vector<2x8x16xf32>
    %177 = arith.addf %173, %176 : vector<2x8x16xf32>
    %c0_61 = arith.constant 0 : index
    %c0_62 = arith.constant 0 : index
    %178 = vector.load %arg16[%c0_61, %c0_62] : memref<4x16xf32, #tpu.memory_space<vmem>>, vector<4x16xf32>
    %c0_63 = arith.constant 0 : index
    %c0_64 = arith.constant 0 : index
    %179 = vector.load %arg17[%c0_63, %c0_64] : memref<16x48xf32, #tpu.memory_space<vmem>>, vector<16x48xf32>
    %c0_65 = arith.constant 0 : index
    %c0_66 = arith.constant 0 : index
    %180 = vector.load %arg18[%c0_65, %c0_66] : memref<3x16xf32, #tpu.memory_space<vmem>>, vector<3x16xf32>
    %c0_67 = arith.constant 0 : index
    %c0_68 = arith.constant 0 : index
    %181 = vector.load %arg19[%c0_67, %c0_68] : memref<16x16xf32, #tpu.memory_space<vmem>>, vector<16x16xf32>
    %c0_69 = arith.constant 0 : index
    %c0_70 = arith.constant 0 : index
    %182 = vector.load %arg20[%c0_69, %c0_70] : memref<1x16xf32, #tpu.memory_space<vmem>>, vector<1x16xf32>
    %c0_71 = arith.constant 0 : index
    %c0_72 = arith.constant 0 : index
    %183 = vector.load %arg21[%c0_71, %c0_72] : memref<16x64xf32, #tpu.memory_space<vmem>>, vector<16x64xf32>
    %c0_73 = arith.constant 0 : index
    %c0_74 = arith.constant 0 : index
    %184 = vector.load %arg22[%c0_73, %c0_74] : memref<1x64xf32, #tpu.memory_space<vmem>>, vector<1x64xf32>
    %c0_75 = arith.constant 0 : index
    %c0_76 = arith.constant 0 : index
    %185 = vector.load %arg23[%c0_75, %c0_76] : memref<64x16xf32, #tpu.memory_space<vmem>>, vector<64x16xf32>
    %c0_77 = arith.constant 0 : index
    %c0_78 = arith.constant 0 : index
    %186 = vector.load %arg24[%c0_77, %c0_78] : memref<1x16xf32, #tpu.memory_space<vmem>>, vector<1x16xf32>
    %187 = vector.extract_strided_slice %178 {offsets = [0, 0], sizes = [1, 16], strides = [1, 1]} : vector<4x16xf32> to vector<1x16xf32>
    %188 = vector.extract_strided_slice %178 {offsets = [1, 0], sizes = [1, 16], strides = [1, 1]} : vector<4x16xf32> to vector<1x16xf32>
    %189 = vector.extract_strided_slice %178 {offsets = [2, 0], sizes = [1, 16], strides = [1, 1]} : vector<4x16xf32> to vector<1x16xf32>
    %190 = vector.extract_strided_slice %178 {offsets = [3, 0], sizes = [1, 16], strides = [1, 1]} : vector<4x16xf32> to vector<1x16xf32>
    %cst_79 = arith.constant dense<0.000000e+00> : vector<2x8xf32>
    %191 = vector.multi_reduction <add>, %177, %cst_79 [2] : vector<2x8x16xf32> to vector<2x8xf32>
    %192 = vector.shape_cast %191 : vector<2x8xf32> to vector<2x8x1xf32>
    %cst_80 = arith.constant 1.600000e+01 : f32
    %193 = vector.broadcast %cst_80 : f32 to vector<2x8x1xf32>
    %194 = arith.divf %192, %193 : vector<2x8x1xf32>
    %195 = vector.broadcast %194 : vector<2x8x1xf32> to vector<2x8x16xf32>
    %196 = arith.subf %177, %195 : vector<2x8x16xf32>
    %197 = arith.mulf %196, %196 : vector<2x8x16xf32>
    %cst_81 = arith.constant dense<0.000000e+00> : vector<2x8xf32>
    %198 = vector.multi_reduction <add>, %197, %cst_81 [2] : vector<2x8x16xf32> to vector<2x8xf32>
    %199 = vector.shape_cast %198 : vector<2x8xf32> to vector<2x8x1xf32>
    %cst_82 = arith.constant 1.600000e+01 : f32
    %200 = vector.broadcast %cst_82 : f32 to vector<2x8x1xf32>
    %201 = arith.divf %199, %200 : vector<2x8x1xf32>
    %202 = vector.broadcast %194 : vector<2x8x1xf32> to vector<2x8x16xf32>
    %203 = arith.subf %177, %202 : vector<2x8x16xf32>
    %cst_83 = arith.constant 9.99999997E-7 : f32
    %204 = vector.broadcast %cst_83 : f32 to vector<2x8x1xf32>
    %205 = arith.addf %201, %204 : vector<2x8x1xf32>
    %206 = math.rsqrt %205 : vector<2x8x1xf32>
    %207 = vector.broadcast %206 : vector<2x8x1xf32> to vector<2x8x16xf32>
    %208 = arith.mulf %203, %207 : vector<2x8x16xf32>
    %209 = vector.shape_cast %187 : vector<1x16xf32> to vector<1x1x16xf32>
    %210 = vector.broadcast %209 : vector<1x1x16xf32> to vector<2x8x16xf32>
    %211 = arith.mulf %208, %210 : vector<2x8x16xf32>
    %212 = vector.shape_cast %188 : vector<1x16xf32> to vector<1x1x16xf32>
    %213 = vector.broadcast %212 : vector<1x1x16xf32> to vector<2x8x16xf32>
    %214 = arith.addf %211, %213 : vector<2x8x16xf32>
    %215 = vector.shape_cast %214 : vector<2x8x16xf32> to vector<16x16xf32>
    %cst_84 = arith.constant dense<0.000000e+00> : vector<16x48xf32>
    %216 = tpu.matmul %215, %179, %cst_84 {dimension_numbers = #tpu.dot_dimension_numbers<[1], [0], [0], [1], [0, 0, 1, 1], [], []>} : vector<16x16xf32>, vector<16x48xf32>, vector<16x48xf32> -> vector<16x48xf32>
    %217 = vector.extract_strided_slice %216 {offsets = [0, 0], sizes = [16, 16], strides = [1, 1]} : vector<16x48xf32> to vector<16x16xf32>
    %218 = vector.extract_strided_slice %180 {offsets = [0, 0], sizes = [1, 16], strides = [1, 1]} : vector<3x16xf32> to vector<1x16xf32>
    %219 = vector.broadcast %218 : vector<1x16xf32> to vector<16x16xf32>
    %220 = arith.addf %217, %219 : vector<16x16xf32>
    %221 = vector.shape_cast %220 : vector<16x16xf32> to vector<2x8x16xf32>
    %222 = vector.extract_strided_slice %216 {offsets = [0, 16], sizes = [16, 16], strides = [1, 1]} : vector<16x48xf32> to vector<16x16xf32>
    %223 = vector.extract_strided_slice %180 {offsets = [1, 0], sizes = [1, 16], strides = [1, 1]} : vector<3x16xf32> to vector<1x16xf32>
    %224 = vector.broadcast %223 : vector<1x16xf32> to vector<16x16xf32>
    %225 = arith.addf %222, %224 : vector<16x16xf32>
    %226 = vector.shape_cast %225 : vector<16x16xf32> to vector<2x8x16xf32>
    %227 = vector.extract_strided_slice %216 {offsets = [0, 32], sizes = [16, 16], strides = [1, 1]} : vector<16x48xf32> to vector<16x16xf32>
    %228 = vector.extract_strided_slice %180 {offsets = [2, 0], sizes = [1, 16], strides = [1, 1]} : vector<3x16xf32> to vector<1x16xf32>
    %229 = vector.broadcast %228 : vector<1x16xf32> to vector<16x16xf32>
    %230 = arith.addf %227, %229 : vector<16x16xf32>
    %231 = vector.shape_cast %230 : vector<16x16xf32> to vector<2x8x16xf32>
    "tpu.trace_start"() <{level = 10 : i32, message = "bnd,bmd->bnm"}> : () -> ()
    %cst_85 = arith.constant dense<0.000000e+00> : vector<2x8x8xf32>
    %232 = tpu.matmul %221, %226, %cst_85 {dimension_numbers = #tpu.dot_dimension_numbers<[2], [2], [1], [1], [0, 0, 0, 1, 1, 1], [0], [0]>} : vector<2x8x16xf32>, vector<2x8x16xf32>, vector<2x8x8xf32> -> vector<2x8x8xf32>
    "tpu.trace_stop"() : () -> ()
    %cst_86 = arith.constant 2.500000e-01 : f32
    %233 = vector.broadcast %cst_86 : f32 to vector<2x8x8xf32>
    %234 = arith.mulf %232, %233 : vector<2x8x8xf32>
    %cst_87 = arith.constant dense<0xFF800000> : vector<2x8xf32>
    %235 = vector.multi_reduction <maximumf>, %234, %cst_87 [2] : vector<2x8x8xf32> to vector<2x8xf32>
    %236 = vector.shape_cast %235 : vector<2x8xf32> to vector<2x8x1xf32>
    %237 = vector.broadcast %236 : vector<2x8x1xf32> to vector<2x8x8xf32>
    %238 = arith.subf %234, %237 : vector<2x8x8xf32>
    %239 = math.exp %238 : vector<2x8x8xf32>
    %cst_88 = arith.constant dense<0.000000e+00> : vector<2x8xf32>
    %240 = vector.multi_reduction <add>, %239, %cst_88 [2] : vector<2x8x8xf32> to vector<2x8xf32>
    %241 = vector.shape_cast %240 : vector<2x8xf32> to vector<2x8x1xf32>
    %242 = tpu.reciprocal %241 {approx = true} : vector<2x8x1xf32> -> vector<2x8x1xf32>
    %243 = vector.broadcast %242 : vector<2x8x1xf32> to vector<2x8x8xf32>
    %244 = arith.mulf %239, %243 : vector<2x8x8xf32>
    "tpu.trace_start"() <{level = 10 : i32, message = "bnm,bmd->bnd"}> : () -> ()
    %cst_89 = arith.constant dense<0.000000e+00> : vector<2x8x16xf32>
    %245 = tpu.matmul %244, %231, %cst_89 {dimension_numbers = #tpu.dot_dimension_numbers<[2], [1], [1], [2], [0, 0, 0, 1, 1, 2], [0], [0]>} : vector<2x8x8xf32>, vector<2x8x16xf32>, vector<2x8x16xf32> -> vector<2x8x16xf32>
    "tpu.trace_stop"() : () -> ()
    %246 = vector.shape_cast %245 : vector<2x8x16xf32> to vector<16x16xf32>
    %cst_90 = arith.constant dense<0.000000e+00> : vector<16x16xf32>
    %247 = tpu.matmul %246, %181, %cst_90 {dimension_numbers = #tpu.dot_dimension_numbers<[1], [0], [0], [1], [0, 0, 1, 1], [], []>} : vector<16x16xf32>, vector<16x16xf32>, vector<16x16xf32> -> vector<16x16xf32>
    %248 = vector.broadcast %182 : vector<1x16xf32> to vector<16x16xf32>
    %249 = arith.addf %247, %248 : vector<16x16xf32>
    %250 = vector.shape_cast %249 : vector<16x16xf32> to vector<2x8x16xf32>
    %251 = arith.addf %177, %250 : vector<2x8x16xf32>
    %cst_91 = arith.constant dense<0.000000e+00> : vector<2x8xf32>
    %252 = vector.multi_reduction <add>, %251, %cst_91 [2] : vector<2x8x16xf32> to vector<2x8xf32>
    %253 = vector.shape_cast %252 : vector<2x8xf32> to vector<2x8x1xf32>
    %cst_92 = arith.constant 1.600000e+01 : f32
    %254 = vector.broadcast %cst_92 : f32 to vector<2x8x1xf32>
    %255 = arith.divf %253, %254 : vector<2x8x1xf32>
    %256 = vector.broadcast %255 : vector<2x8x1xf32> to vector<2x8x16xf32>
    %257 = arith.subf %251, %256 : vector<2x8x16xf32>
    %258 = arith.mulf %257, %257 : vector<2x8x16xf32>
    %cst_93 = arith.constant dense<0.000000e+00> : vector<2x8xf32>
    %259 = vector.multi_reduction <add>, %258, %cst_93 [2] : vector<2x8x16xf32> to vector<2x8xf32>
    %260 = vector.shape_cast %259 : vector<2x8xf32> to vector<2x8x1xf32>
    %cst_94 = arith.constant 1.600000e+01 : f32
    %261 = vector.broadcast %cst_94 : f32 to vector<2x8x1xf32>
    %262 = arith.divf %260, %261 : vector<2x8x1xf32>
    %263 = vector.broadcast %255 : vector<2x8x1xf32> to vector<2x8x16xf32>
    %264 = arith.subf %251, %263 : vector<2x8x16xf32>
    %cst_95 = arith.constant 9.99999997E-7 : f32
    %265 = vector.broadcast %cst_95 : f32 to vector<2x8x1xf32>
    %266 = arith.addf %262, %265 : vector<2x8x1xf32>
    %267 = math.rsqrt %266 : vector<2x8x1xf32>
    %268 = vector.broadcast %267 : vector<2x8x1xf32> to vector<2x8x16xf32>
    %269 = arith.mulf %264, %268 : vector<2x8x16xf32>
    %270 = vector.shape_cast %189 : vector<1x16xf32> to vector<1x1x16xf32>
    %271 = vector.broadcast %270 : vector<1x1x16xf32> to vector<2x8x16xf32>
    %272 = arith.mulf %269, %271 : vector<2x8x16xf32>
    %273 = vector.shape_cast %190 : vector<1x16xf32> to vector<1x1x16xf32>
    %274 = vector.broadcast %273 : vector<1x1x16xf32> to vector<2x8x16xf32>
    %275 = arith.addf %272, %274 : vector<2x8x16xf32>
    %276 = vector.shape_cast %275 : vector<2x8x16xf32> to vector<16x16xf32>
    %cst_96 = arith.constant dense<0.000000e+00> : vector<16x64xf32>
    %277 = tpu.matmul %276, %183, %cst_96 {dimension_numbers = #tpu.dot_dimension_numbers<[1], [0], [0], [1], [0, 0, 1, 1], [], []>} : vector<16x16xf32>, vector<16x64xf32>, vector<16x64xf32> -> vector<16x64xf32>
    %278 = vector.broadcast %184 : vector<1x64xf32> to vector<16x64xf32>
    %279 = arith.addf %277, %278 : vector<16x64xf32>
    %280 = arith.mulf %279, %279 : vector<16x64xf32>
    %281 = arith.mulf %279, %280 : vector<16x64xf32>
    %cst_97 = arith.constant 4.471500e-02 : f32
    %282 = vector.broadcast %cst_97 : f32 to vector<16x64xf32>
    %283 = arith.mulf %282, %281 : vector<16x64xf32>
    %284 = arith.addf %279, %283 : vector<16x64xf32>
    %cst_98 = arith.constant 0.797884583 : f32
    %285 = vector.broadcast %cst_98 : f32 to vector<16x64xf32>
    %286 = arith.mulf %285, %284 : vector<16x64xf32>
    %287 = math.tanh %286 : vector<16x64xf32>
    %cst_99 = arith.constant 1.000000e+00 : f32
    %288 = vector.broadcast %cst_99 : f32 to vector<16x64xf32>
    %289 = arith.addf %288, %287 : vector<16x64xf32>
    %cst_100 = arith.constant 5.000000e-01 : f32
    %290 = vector.broadcast %cst_100 : f32 to vector<16x64xf32>
    %291 = arith.mulf %290, %289 : vector<16x64xf32>
    %292 = arith.mulf %279, %291 : vector<16x64xf32>
    %cst_101 = arith.constant dense<0.000000e+00> : vector<16x16xf32>
    %293 = tpu.matmul %292, %185, %cst_101 {dimension_numbers = #tpu.dot_dimension_numbers<[1], [0], [0], [1], [0, 0, 1, 1], [], []>} : vector<16x64xf32>, vector<64x16xf32>, vector<16x16xf32> -> vector<16x16xf32>
    %294 = vector.broadcast %186 : vector<1x16xf32> to vector<16x16xf32>
    %295 = arith.addf %293, %294 : vector<16x16xf32>
    %296 = vector.shape_cast %295 : vector<16x16xf32> to vector<2x8x16xf32>
    %297 = arith.addf %251, %296 : vector<2x8x16xf32>
    %c0_102 = arith.constant 0 : index
    %c0_103 = arith.constant 0 : index
    %298 = vector.load %arg25[%c0_102, %c0_103] : memref<2x16xf32, #tpu.memory_space<vmem>>, vector<2x16xf32>
    %299 = vector.extract_strided_slice %298 {offsets = [0, 0], sizes = [1, 16], strides = [1, 1]} : vector<2x16xf32> to vector<1x16xf32>
    %300 = vector.extract_strided_slice %298 {offsets = [1, 0], sizes = [1, 16], strides = [1, 1]} : vector<2x16xf32> to vector<1x16xf32>
    %cst_104 = arith.constant dense<0.000000e+00> : vector<2x8xf32>
    %301 = vector.multi_reduction <add>, %297, %cst_104 [2] : vector<2x8x16xf32> to vector<2x8xf32>
    %302 = vector.shape_cast %301 : vector<2x8xf32> to vector<2x8x1xf32>
    %cst_105 = arith.constant 1.600000e+01 : f32
    %303 = vector.broadcast %cst_105 : f32 to vector<2x8x1xf32>
    %304 = arith.divf %302, %303 : vector<2x8x1xf32>
    %305 = vector.broadcast %304 : vector<2x8x1xf32> to vector<2x8x16xf32>
    %306 = arith.subf %297, %305 : vector<2x8x16xf32>
    %307 = arith.mulf %306, %306 : vector<2x8x16xf32>
    %cst_106 = arith.constant dense<0.000000e+00> : vector<2x8xf32>
    %308 = vector.multi_reduction <add>, %307, %cst_106 [2] : vector<2x8x16xf32> to vector<2x8xf32>
    %309 = vector.shape_cast %308 : vector<2x8xf32> to vector<2x8x1xf32>
    %cst_107 = arith.constant 1.600000e+01 : f32
    %310 = vector.broadcast %cst_107 : f32 to vector<2x8x1xf32>
    %311 = arith.divf %309, %310 : vector<2x8x1xf32>
    %312 = vector.broadcast %304 : vector<2x8x1xf32> to vector<2x8x16xf32>
    %313 = arith.subf %297, %312 : vector<2x8x16xf32>
    %cst_108 = arith.constant 9.99999997E-7 : f32
    %314 = vector.broadcast %cst_108 : f32 to vector<2x8x1xf32>
    %315 = arith.addf %311, %314 : vector<2x8x1xf32>
    %316 = math.rsqrt %315 : vector<2x8x1xf32>
    %317 = vector.broadcast %316 : vector<2x8x1xf32> to vector<2x8x16xf32>
    %318 = arith.mulf %313, %317 : vector<2x8x16xf32>
    %319 = vector.shape_cast %299 : vector<1x16xf32> to vector<1x1x16xf32>
    %320 = vector.broadcast %319 : vector<1x1x16xf32> to vector<2x8x16xf32>
    %321 = arith.mulf %318, %320 : vector<2x8x16xf32>
    %322 = vector.shape_cast %300 : vector<1x16xf32> to vector<1x1x16xf32>
    %323 = vector.broadcast %322 : vector<1x1x16xf32> to vector<2x8x16xf32>
    %324 = arith.addf %321, %323 : vector<2x8x16xf32>
    %325 = vector.shape_cast %324 : vector<2x8x16xf32> to vector<16x16xf32>
    %c0_109 = arith.constant 0 : index
    %c0_110 = arith.constant 0 : index
    %326 = vector.load %arg26[%c0_109, %c0_110] : memref<16x32xf32, #tpu.memory_space<vmem>>, vector<16x32xf32>
    %cst_111 = arith.constant dense<0.000000e+00> : vector<16x32xf32>
    %327 = tpu.matmul %325, %326, %cst_111 {dimension_numbers = #tpu.dot_dimension_numbers<[1], [0], [0], [1], [0, 0, 1, 1], [], []>} : vector<16x16xf32>, vector<16x32xf32>, vector<16x32xf32> -> vector<16x32xf32>
    %c0_112 = arith.constant 0 : index
    %c0_113 = arith.constant 0 : index
    %328 = vector.load %arg27[%c0_112, %c0_113] : memref<1x32xf32, #tpu.memory_space<vmem>>, vector<1x32xf32>
    %329 = vector.broadcast %328 : vector<1x32xf32> to vector<16x32xf32>
    %330 = arith.addf %327, %329 : vector<16x32xf32>
    %331 = vector.shape_cast %330 : vector<16x32xf32> to vector<2x8x32xf32>
    %c0_114 = arith.constant 0 : index
    %c0_115 = arith.constant 0 : index
    %c0_116 = arith.constant 0 : index
    %332 = vector.load %arg28[%c0_114, %c0_115, %c0_116] : memref<2x8x32xf32, #tpu.memory_space<vmem>>, vector<2x8x32xf32>
    tpu.vector_store %arg28[%c0_114, %c0_115, %c0_116], %331 {strides = array<i32>} : memref<2x8x32xf32, #tpu.memory_space<vmem>>, vector<2x8x32xf32>,
    return
  }
}

</mosaic_0001>

<llo_original>
// kernel: temporal_mae_forward.1
$region0: #{temporal_mae_forward.1}
  #allocation0 [shape = 'u32[]', space=smem, size = 0x4, offset = 0x4, fixed_abs, tag = 'smem constant byte address 0x4 - core index']
  #allocation1 [shape = 'u32[144,128]{1,0:T(1,128)}', space=vmem, size = 0x12000, scoped, tag = 'internal scratch']
  %s0 = inlined_call_operand.vmem [shape: f32[2,4,32], index: 0, kind: input, shape index: {}]
  %s1 = inlined_call_operand.vmem [shape: s32[2,8], index: 1, kind: input, shape index: {}]
  %s2 = inlined_call_operand.vmem [shape: f32[4,32], index: 2, kind: input, shape index: {}]
  %s3 = inlined_call_operand.vmem [shape: f32[32,96], index: 3, kind: input, shape index: {}]
  %s4 = inlined_call_operand.vmem [shape: f32[3,32], index: 4, kind: input, shape index: {}]
  %s5 = inlined_call_operand.vmem [shape: f32[32,32], index: 5, kind: input, shape index: {}]
  %s6 = inlined_call_operand.vmem [shape: f32[1,32], index: 6, kind: input, shape index: {}]
  %s7 = inlined_call_operand.vmem [shape: f32[32,128], index: 7, kind: input, shape index: {}]
  %s8 = inlined_call_operand.vmem [shape: f32[1,128], index: 8, kind: input, shape index: {}]
  %s9 = inlined_call_operand.vmem [shape: f32[128,32], index: 9, kind: input, shape index: {}]
  %s10 = inlined_call_operand.vmem [shape: f32[1,32], index: 10, kind: input, shape index: {}]
  %s11 = inlined_call_operand.vmem [shape: f32[2,32], index: 11, kind: input, shape index: {}]
  %s12 = inlined_call_operand.vmem [shape: f32[32,16], index: 12, kind: input, shape index: {}]
  %s13 = inlined_call_operand.vmem [shape: f32[1,16], index: 13, kind: input, shape index: {}]
  %s14 = inlined_call_operand.vmem [shape: f32[1,16], index: 14, kind: input, shape index: {}]
  %s15 = inlined_call_operand.vmem [shape: f32[8,16], index: 15, kind: input, shape index: {}]
  %s16 = inlined_call_operand.vmem [shape: f32[4,16], index: 16, kind: input, shape index: {}]
  %s17 = inlined_call_operand.vmem [shape: f32[16,48], index: 17, kind: input, shape index: {}]
  %s18 = inlined_call_operand.vmem [shape: f32[3,16], index: 18, kind: input, shape index: {}]
  %s19 = inlined_call_operand.vmem [shape: f32[16,16], index: 19, kind: input, shape index: {}]
  %s20 = inlined_call_operand.vmem [shape: f32[1,16], index: 20, kind: input, shape index: {}]
  %s21 = inlined_call_operand.vmem [shape: f32[16,64], index: 21, kind: input, shape index: {}]
  %s22 = inlined_call_operand.vmem [shape: f32[1,64], index: 22, kind: input, shape index: {}]
  %s23 = inlined_call_operand.vmem [shape: f32[64,16], index: 23, kind: input, shape index: {}]
  %s24 = inlined_call_operand.vmem [shape: f32[1,16], index: 24, kind: input, shape index: {}]
  %s25 = inlined_call_operand.vmem [shape: f32[2,16], index: 25, kind: input, shape index: {}]
  %s26 = inlined_call_operand.vmem [shape: f32[16,32], index: 26, kind: input, shape index: {}]
  %s27 = inlined_call_operand.vmem [shape: f32[1,32], index: 27, kind: input, shape index: {}]
  %s28 = inlined_call_operand.hbm [shape: f32[2,8,32], index: 28, kind: output, shape index: {}]
  %s29 = sld [smem:[#allocation0]]
  $region122: #{temporal_mae_forward.1} parent=0
    _
  %s31 = ssub.s32 1, %s29
  %s32 = scalar_select 0, %s31, %s29
  $region1: #{temporal_mae_forward.1} parent=0
    #allocation2 [shape = 'u8[8192]{0}', space=vmem, size = 0x2000, scoped, tag = 'output window, operand 0, single buffered']
    #allocation3 [shape = 's32[1]{0}', space=sflag, size = 0x4, scoped, tag = 'scoped memory for temporal_mae_forward.1']
    %33 = vsyncpa [#allocation3], 0
    // Predicated region
    $region2: #{temporal_mae_forward.1} parent=1 // pred_check
      _
    $region3: #{temporal_mae_forward.1} parent=1 // pred_check_branch
      %35 = sbr.rel (0) target = $region5
    $region4: #{temporal_mae_forward.1} parent=1 // pred_region
      _
    $region5: #{temporal_mae_forward.1} parent=1 // pred_fallthru
      _
    // Predicated region
    $region6: #{temporal_mae_forward.1} parent=1 // pred_check
      _
    $region7: #{temporal_mae_forward.1} parent=1 // pred_check_branch
      %37 = sbr.rel (0) target = $region9
    $region8: #{temporal_mae_forward.1} parent=1 // pred_region
      _
    $region9: #{temporal_mae_forward.1} parent=1 // pred_fallthru
      _
    // Predicated region
    $region10: #{temporal_mae_forward.1} parent=1 // pred_check
      _
    $region11: #{temporal_mae_forward.1} parent=1 // pred_check_branch
      %39 = sbr.rel (0) target = $region13
    $region12: #{temporal_mae_forward.1} parent=1 // pred_region
      _
    $region13: #{temporal_mae_forward.1} parent=1 // pred_fallthru
      _
    // Predicated region
    $region14: #{temporal_mae_forward.1} parent=1 // pred_check
      _
    $region15: #{temporal_mae_forward.1} parent=1 // pred_check_branch
      %41 = sbr.rel (0) target = $region17
    $region16: #{temporal_mae_forward.1} parent=1 // pred_region
      _
    $region17: #{temporal_mae_forward.1} parent=1 // pred_fallthru
      _
    // Predicated region
    $region18: #{temporal_mae_forward.1} parent=1 // pred_check
      _
    $region19: #{temporal_mae_forward.1} parent=1 // pred_check_branch
      %43 = sbr.rel (0) target = $region21
    $region20: #{temporal_mae_forward.1} parent=1 // pred_region
      _
    $region21: #{temporal_mae_forward.1} parent=1 // pred_fallthru
      _
    // Predicated region
    $region22: #{temporal_mae_forward.1} parent=1 // pred_check
      _
    $region23: #{temporal_mae_forward.1} parent=1 // pred_check_branch
      %45 = sbr.rel (0) target = $region25
    $region24: #{temporal_mae_forward.1} parent=1 // pred_region
      _
    $region25: #{temporal_mae_forward.1} parent=1 // pred_fallthru
      _
    // Predicated region
    $region26: #{temporal_mae_forward.1} parent=1 // pred_check
      _
    $region27: #{temporal_mae_forward.1} parent=1 // pred_check_branch
      %47 = sbr.rel (0) target = $region29
    $region28: #{temporal_mae_forward.1} parent=1 // pred_region
      _
    $region29: #{temporal_mae_forward.1} parent=1 // pred_fallthru
      _
    // Predicated region
    $region30: #{temporal_mae_forward.1} parent=1 // pred_check
      _
    $region31: #{temporal_mae_forward.1} parent=1 // pred_check_branch
      %49 = sbr.rel (0) target = $region33
    $region32: #{temporal_mae_forward.1} parent=1 // pred_region
      _
    $region33: #{temporal_mae_forward.1} parent=1 // pred_fallthru
      _
    // Predicated region
    $region34: #{temporal_mae_forward.1} parent=1 // pred_check
      _
    $region35: #{temporal_mae_forward.1} parent=1 // pred_check_branch
      %51 = sbr.rel (0) target = $region37
    $region36: #{temporal_mae_forward.1} parent=1 // pred_region
      _
    $region37: #{temporal_mae_forward.1} parent=1 // pred_fallthru
      _
    // Predicated region
    $region38: #{temporal_mae_forward.1} parent=1 // pred_check
      _
    $region39: #{temporal_mae_forward.1} parent=1 // pred_check_branch
      %53 = sbr.rel (0) target = $region41
    $region40: #{temporal_mae_forward.1} parent=1 // pred_region
      _
    $region41: #{temporal_mae_forward.1} parent=1 // pred_fallthru
      _
    // Predicated region
    $region42: #{temporal_mae_forward.1} parent=1 // pred_check
      _
    $region43: #{temporal_mae_forward.1} parent=1 // pred_check_branch
      %55 = sbr.rel (0) target = $region45
    $region44: #{temporal_mae_forward.1} parent=1 // pred_region
      _
    $region45: #{temporal_mae_forward.1} parent=1 // pred_fallthru
      _
    // Predicated region
    $region46: #{temporal_mae_forward.1} parent=1 // pred_check
      _
    $region47: #{temporal_mae_forward.1} parent=1 // pred_check_branch
      %57 = sbr.rel (0) target = $region49
    $region48: #{temporal_mae_forward.1} parent=1 // pred_region
      _
    $region49: #{temporal_mae_forward.1} parent=1 // pred_fallthru
      _
    // Predicated region
    $region50: #{temporal_mae_forward.1} parent=1 // pred_check
      _
    $region51: #{temporal_mae_forward.1} parent=1 // pred_check_branch
      %59 = sbr.rel (0) target = $region53
    $region52: #{temporal_mae_forward.1} parent=1 // pred_region
      _
    $region53: #{temporal_mae_forward.1} parent=1 // pred_fallthru
      _
    // Predicated region
    $region54: #{temporal_mae_forward.1} parent=1 // pred_check
      _
    $region55: #{temporal_mae_forward.1} parent=1 // pred_check_branch
      %61 = sbr.rel (0) target = $region57
    $region56: #{temporal_mae_forward.1} parent=1 // pred_region
      _
    $region57: #{temporal_mae_forward.1} parent=1 // pred_fallthru
      _
    // Predicated region
    $region58: #{temporal_mae_forward.1} parent=1 // pred_check
      _
    $region59: #{temporal_mae_forward.1} parent=1 // pred_check_branch
      %63 = sbr.rel (0) target = $region61
    $region60: #{temporal_mae_forward.1} parent=1 // pred_region
      _
    $region61: #{temporal_mae_forward.1} parent=1 // pred_fallthru
      _
    // Predicated region
    $region62: #{temporal_mae_forward.1} parent=1 // pred_check
      _
    $region63: #{temporal_mae_forward.1} parent=1 // pred_check_branch
      %65 = sbr.rel (0) target = $region65
    $region64: #{temporal_mae_forward.1} parent=1 // pred_region
      _
    $region65: #{temporal_mae_forward.1} parent=1 // pred_fallthru
      _
    // Predicated region
    $region66: #{temporal_mae_forward.1} parent=1 // pred_check
      _
    $region67: #{temporal_mae_forward.1} parent=1 // pred_check_branch
      %67 = sbr.rel (0) target = $region69
    $region68: #{temporal_mae_forward.1} parent=1 // pred_region
      _
    $region69: #{temporal_mae_forward.1} parent=1 // pred_fallthru
      _
    // Predicated region
    $region70: #{temporal_mae_forward.1} parent=1 // pred_check
      _
    $region71: #{temporal_mae_forward.1} parent=1 // pred_check_branch
      %69 = sbr.rel (0) target = $region73
    $region72: #{temporal_mae_forward.1} parent=1 // pred_region
      _
    $region73: #{temporal_mae_forward.1} parent=1 // pred_fallthru
      _
    // Predicated region
    $region74: #{temporal_mae_forward.1} parent=1 // pred_check
      _
    $region75: #{temporal_mae_forward.1} parent=1 // pred_check_branch
      %71 = sbr.rel (0) target = $region77
    $region76: #{temporal_mae_forward.1} parent=1 // pred_region
      _
    $region77: #{temporal_mae_forward.1} parent=1 // pred_fallthru
      _
    // Predicated region
    $region78: #{temporal_mae_forward.1} parent=1 // pred_check
      _
    $region79: #{temporal_mae_forward.1} parent=1 // pred_check_branch
      %73 = sbr.rel (0) target = $region81
    $region80: #{temporal_mae_forward.1} parent=1 // pred_region
      _
    $region81: #{temporal_mae_forward.1} parent=1 // pred_fallthru
      _
    // Predicated region
    $region82: #{temporal_mae_forward.1} parent=1 // pred_check
      _
    $region83: #{temporal_mae_forward.1} parent=1 // pred_check_branch
      %75 = sbr.rel (0) target = $region85
    $region84: #{temporal_mae_forward.1} parent=1 // pred_region
      _
    $region85: #{temporal_mae_forward.1} parent=1 // pred_fallthru
      _
    // Predicated region
    $region86: #{temporal_mae_forward.1} parent=1 // pred_check
      _
    $region87: #{temporal_mae_forward.1} parent=1 // pred_check_branch
      %77 = sbr.rel (0) target = $region89
    $region88: #{temporal_mae_forward.1} parent=1 // pred_region
      _
    $region89: #{temporal_mae_forward.1} parent=1 // pred_fallthru
      _
    // Predicated region
    $region90: #{temporal_mae_forward.1} parent=1 // pred_check
      _
    $region91: #{temporal_mae_forward.1} parent=1 // pred_check_branch
      %79 = sbr.rel (0) target = $region93
    $region92: #{temporal_mae_forward.1} parent=1 // pred_region
      _
    $region93: #{temporal_mae_forward.1} parent=1 // pred_fallthru
      _
    // Predicated region
    $region94: #{temporal_mae_forward.1} parent=1 // pred_check
      _
    $region95: #{temporal_mae_forward.1} parent=1 // pred_check_branch
      %81 = sbr.rel (0) target = $region97
    $region96: #{temporal_mae_forward.1} parent=1 // pred_region
      _
    $region97: #{temporal_mae_forward.1} parent=1 // pred_fallthru
      _
    // Predicated region
    $region98: #{temporal_mae_forward.1} parent=1 // pred_check
      _
    $region99: #{temporal_mae_forward.1} parent=1 // pred_check_branch
      %83 = sbr.rel (0) target = $region101
    $region100: #{temporal_mae_forward.1} parent=1 // pred_region
      _
    $region101: #{temporal_mae_forward.1} parent=1 // pred_fallthru
      _
    // Predicated region
    $region102: #{temporal_mae_forward.1} parent=1 // pred_check
      _
    $region103: #{temporal_mae_forward.1} parent=1 // pred_check_branch
      %85 = sbr.rel (0) target = $region105
    $region104: #{temporal_mae_forward.1} parent=1 // pred_region
      _
    $region105: #{temporal_mae_forward.1} parent=1 // pred_fallthru
      _
    // Predicated region
    $region106: #{temporal_mae_forward.1} parent=1 // pred_check
      _
    $region107: #{temporal_mae_forward.1} parent=1 // pred_check_branch
      %87 = sbr.rel (0) target = $region109
    $region108: #{temporal_mae_forward.1} parent=1 // pred_region
      _
    $region109: #{temporal_mae_forward.1} parent=1 // pred_fallthru
      _
    // Predicated region
    $region110: #{temporal_mae_forward.1} parent=1 // pred_check
      _
    $region111: #{temporal_mae_forward.1} parent=1 // pred_check_branch
      %89 = sbr.rel (0) target = $region113
    $region112: #{temporal_mae_forward.1} parent=1 // pred_region
      _
    $region113: #{temporal_mae_forward.1} parent=1 // pred_fallthru
      _
    %v90 = vld [vmem:[%s0] sm:$0xf]
    %v91 = vld [vmem:[%s0 + $0x4] sm:$0xf]
    %v92 = vld [vmem:[%s2] sm:$0xf]
    %v93 = vld [vmem:[%s3] sm:$0xff]
    %v94 = vld [vmem:[%s3 + $0x8] sm:$0xff]
    %v95 = vld [vmem:[%s3 + $0x10] sm:$0xff]
    %v96 = vld [vmem:[%s3 + $0x18] sm:$0xff]
    %v97 = vld [vmem:[%s4] sm:$0x7]
    %v98 = vld [vmem:[%s5] sm:$0xff]
    %v99 = vld [vmem:[%s5 + $0x8] sm:$0xff]
    %v100 = vld [vmem:[%s5 + $0x10] sm:$0xff]
    %v101 = vld [vmem:[%s5 + $0x18] sm:$0xff]
    %v102 = vld [vmem:[%s6] sm:$0x1]
    %v103 = vld [vmem:[%s7] sm:$0xff]
    %v104 = vld [vmem:[%s7 + $0x8] sm:$0xff]
    %v105 = vld [vmem:[%s7 + $0x10] sm:$0xff]
    %v106 = vld [vmem:[%s7 + $0x18] sm:$0xff]
    %v107 = vld [vmem:[%s8] sm:$0x1]
    %v108 = vld [vmem:[%s9] sm:$0xff]
    %v109 = vld [vmem:[%s9 + $0x8] sm:$0xff]
    %v110 = vld [vmem:[%s9 + $0x10] sm:$0xff]
    %v111 = vld [vmem:[%s9 + $0x18] sm:$0xff]
    %v112 = vld [vmem:[%s9 + $0x20] sm:$0xff]
    %v113 = vld [vmem:[%s9 + $0x28] sm:$0xff]
    %v114 = vld [vmem:[%s9 + $0x30] sm:$0xff]
    %v115 = vld [vmem:[%s9 + $0x38] sm:$0xff]
    %v116 = vld [vmem:[%s9 + $0x40] sm:$0xff]
    %v117 = vld [vmem:[%s9 + $0x48] sm:$0xff]
    %v118 = vld [vmem:[%s9 + $0x50] sm:$0xff]
    %v119 = vld [vmem:[%s9 + $0x58] sm:$0xff]
    %v120 = vld [vmem:[%s9 + $0x60] sm:$0xff]
    %v121 = vld [vmem:[%s9 + $0x68] sm:$0xff]
    %v122 = vld [vmem:[%s9 + $0x70] sm:$0xff]
    %v123 = vld [vmem:[%s9 + $0x78] sm:$0xff]
    %v124 = vld [vmem:[%s10] sm:$0x1]
    %vm125 = vcmask 257024
    %v126 = vsel %vm125, %v90, 0.0
    %127 = vadd.xlane.f32.xlu0 %v126
    %v128 = vpop.xlane.xlu0 %127
    %v129 = vsel %vm125, %v91, 0.0
    %130 = vadd.xlane.f32.xlu0 %v129
    %v131 = vpop.xlane.xlu0 %130
    %v132 = vrcp.pop 32.0
    %v133 = vmul.f32 %v128, %v132
    %v134 = vmul.f32 %v131, %v132
    %v135 = vsub.f32 %v90, %v133
    %v136 = vsub.f32 %v91, %v134
    %v137 = vmul.f32 %v135, %v135
    %v138 = vmul.f32 %v136, %v136
    %v139 = vsel %vm125, %v137, 0.0
    %140 = vadd.xlane.f32.xlu0 %v139
    %v141 = vpop.xlane.xlu0 %140
    %v142 = vsel %vm125, %v138, 0.0
    %143 = vadd.xlane.f32.xlu0 %v142
    %v144 = vpop.xlane.xlu0 %143
    %v145 = vmul.f32 %v141, %v132
    %v146 = vmul.f32 %v144, %v132
    %v147 = vadd.f32 %v145, 1e-06
    %v148 = vadd.f32 %v146, 1e-06
    %v149 = vrsqrt.pop %v147
    %v150 = vrsqrt.pop %v148
    %v151 = vmul.f32 %v135, %v149
    %v152 = vmul.f32 %v136, %v150
    %v153 = vlaneseq
    %v154 = vshrl.u32 %v153, 7
    %v155 = vsub.s32 0, %v154
    %v156 = vrot.slane %v92, %v155
    %v157 = vmul.f32 %v151, %v156
    %v158 = vmul.f32 %v152, %v156
    %v159 = vlaneseq
    %v160 = vshrl.u32 %v159, 7
    %v161 = vsub.s32 1, %v160
    %v162 = vrot.slane %v92, %v161
    %v163 = vadd.f32 %v157, %v162
    %v164 = vadd.f32 %v158, %v162
    %v167 = vcombine.low %v163, %v164
    %vm168 = vcmask 261120
    %v169 = vsel %vm168, %v167, 0
    %171 = vmatprep.subr.mxu0 0.0
    %172 = vmatpush1.msra.mxu0 0.0
    %173 = vmatprep.subr.mxu0 0.0
    %174 = vmatpush1.msra.mxu0 0.0
    %175 = vmatprep.subr.mxu0 0.0
    %176 = vmatpush1.msra.mxu0 0.0
    %177 = vmatprep.subr.mxu0 0.0
    %178 = vmatpush1.msra.mxu0 0.0
    %179 = vmatprep.subr.mxu0 0.0
    %180 = vmatpush1.msra.mxu0 0.0
    %181 = vmatprep.subr.mxu0 0.0
    %182 = vmatpush1.msra.mxu0 0.0
    %183 = vmatprep.subr.mxu0 0.0
    %184 = vmatpush1.msra.mxu0 0.0
    %185 = vmatprep.subr.mxu0 0.0
    %186 = vmatpush1.msra.mxu0 0.0
    %187 = vmatprep.subr.mxu0 0.0
    %188 = vmatpush1.msra.mxu0 0.0
    %189 = vmatprep.subr.mxu0 0.0
    %190 = vmatpush1.msra.mxu0 0.0
    %191 = vmatprep.subr.mxu0 0.0
    %192 = vmatpush1.msra.mxu0 0.0
    %193 = vmatprep.subr.mxu0 0.0
    %194 = vmatpush1.msra.mxu0 0.0
    %195 = vmatprep.subr.mxu0 0.0
    %196 = vmatpush1.msra.mxu0 %v96
    %197 = vmatprep.subr.mxu0 0.0
    %198 = vmatpush1.msra.mxu0 %v95
    %199 = vmatprep.subr.mxu0 0.0
    %200 = vmatpush1.msra.mxu0 %v94
    %201 = vmatprep.subr.mxu0 0.0
    %202 = vmatpush1.msra.mxu0 %v93
    %203 = vmatprep.subr.mxu0 0.0
    %204 = vmatpush2.msra.mxu0 0.0
    %205 = vmatprep.subr.mxu0 0.0
    %206 = vmatpush2.msra.mxu0 0.0
    %207 = vmatprep.subr.mxu0 0.0
    %208 = vmatpush2.msra.mxu0 0.0
    %209 = vmatprep.subr.mxu0 0.0
    %210 = vmatpush2.msra.mxu0 0.0
    %211 = vmatprep.subr.mxu0 0.0
    %212 = vmatpush2.msra.mxu0 0.0
    %213 = vmatprep.subr.mxu0 0.0
    %214 = vmatpush2.msra.mxu0 0.0
    %215 = vmatprep.subr.mxu0 0.0
    %216 = vmatpush2.msra.mxu0 0.0
    %217 = vmatprep.subr.mxu0 0.0
    %218 = vmatpush2.msra.mxu0 0.0
    %219 = vmatprep.subr.mxu0 0.0
    %220 = vmatpush2.msra.mxu0 0.0
    %221 = vmatprep.subr.mxu0 0.0
    %222 = vmatpush2.msra.mxu0 0.0
    %223 = vmatprep.subr.mxu0 0.0
    %224 = vmatpush2.msra.mxu0 0.0
    %225 = vmatprep.subr.mxu0 0.0
    %226 = vmatpush2.msra.mxu0 0.0
    %227 = vmatprep.subr.mxu0 0.0
    %228 = vmatpush2.msra.mxu0 0.0
    %229 = vmatprep.subr.mxu0 0.0
    %230 = vmatpush2.msra.mxu0 0.0
    %231 = vmatprep.subr.mxu0 0.0
    %232 = vmatpush2.msra.mxu0 0.0
    %233 = vmatprep.subr.mxu0 0.0
    %234 = vmatpush2.msra.mxu0 0.0
    %235 = vmatprep.mubr.f32.mxu0 0.0
    %236 = vmatmul.mubr.f32.gmra.mxu0 %v169
    %v237 = vpop.f32.mrf.mxu0
    %v238 = vadd.f32 0.0, %v237
    %v239 = vpop.f32.mrf.mxu0
    %240 = vdwg.mxu0
    %v241 = vlaneseq
    %v242 = vshrl.u32 %v241, 7
    %v243 = vsub.s32 0, %v242
    %v244 = vrot.slane %v97, %v243
    %v245 = vadd.f32 %v238, %v244
    %v247 = vcombine.high %v245, %v245
    %v248 = vlaneseq
    %v249 = vshrl.u32 %v248, 7
    %v250 = vsub.s32 1, %v249
    %v251 = vrot.slane %v97, %v250
    %253 = vrot.lane.b32.xlu0 %v251, 32
    %v254 = vpop.permute.xlu0 %253
    %v256 = vadd.f32 %v238, %v254
    %v258 = vcombine.high %v256, %v256
    %v259 = vlaneseq
    %v260 = vshrl.u32 %v259, 7
    %v261 = vsub.s32 2, %v260
    %v262 = vrot.slane %v97, %v261
    %264 = vrot.lane.b32.xlu0 %v262, 64
    %v265 = vpop.permute.xlu0 %264
    %v267 = vadd.f32 %v238, %v265
    %v269 = vcombine.high %v267, %v267
    %270 = vrot.lane.b32.xlu0 %v256, 96
    %v271 = vpop.permute.xlu0 %270
    %v272 = vsel %vm168, %v245, 0
    %v274 = vsel %vm168, %v271, 0
    %276 = vmatprep.subr.mxu0 0.0
    %277 = vmatpush1.xpose.msra.mxu0 0.0
    %278 = vmatprep.subr.mxu0 0.0
    %279 = vmatpush1.xpose.msra.mxu0 0.0
    %280 = vmatprep.subr.mxu0 0.0
    %281 = vmatpush1.xpose.msra.mxu0 0.0
    %282 = vmatprep.subr.mxu0 0.0
    %283 = vmatpush1.xpose.msra.mxu0 0.0
    %284 = vmatprep.subr.mxu0 0.0
    %285 = vmatpush1.xpose.msra.mxu0 0.0
    %286 = vmatprep.subr.mxu0 0.0
    %287 = vmatpush1.xpose.msra.mxu0 0.0
    %288 = vmatprep.subr.mxu0 0.0
    %289 = vmatpush1.xpose.msra.mxu0 0.0
    %290 = vmatprep.subr.mxu0 0.0
    %291 = vmatpush1.xpose.msra.mxu0 0.0
    %292 = vmatprep.subr.mxu0 0.0
    %293 = vmatpush1.xpose.msra.mxu0 0.0
    %294 = vmatprep.subr.mxu0 0.0
    %295 = vmatpush1.xpose.msra.mxu0 0.0
    %296 = vmatprep.subr.mxu0 0.0
    %297 = vmatpush1.xpose.msra.mxu0 0.0
    %298 = vmatprep.subr.mxu0 0.0
    %299 = vmatpush1.xpose.msra.mxu0 0.0
    %300 = vmatprep.subr.mxu0 0.0
    %301 = vmatpush1.xpose.msra.mxu0 0.0
    %302 = vmatprep.subr.mxu0 0.0
    %303 = vmatpush1.xpose.msra.mxu0 0.0
    %304 = vmatprep.subr.mxu0 0.0
    %305 = vmatpush1.xpose.msra.mxu0 0.0
    %306 = vmatprep.subr.mxu0 0.0
    %307 = vmatpush1.xpose.msra.mxu0 %v274
    %308 = vmatprep.subr.mxu0 0.0
    %309 = vmatpush2.xpose.msra.mxu0 0.0
    %310 = vmatprep.subr.mxu0 0.0
    %311 = vmatpush2.xpose.msra.mxu0 0.0
    %312 = vmatprep.subr.mxu0 0.0
    %313 = vmatpush2.xpose.msra.mxu0 0.0
    %314 = vmatprep.subr.mxu0 0.0
    %315 = vmatpush2.xpose.msra.mxu0 0.0
    %316 = vmatprep.subr.mxu0 0.0
    %317 = vmatpush2.xpose.msra.mxu0 0.0
    %318 = vmatprep.subr.mxu0 0.0
    %319 = vmatpush2.xpose.msra.mxu0 0.0
    %320 = vmatprep.subr.mxu0 0.0
    %321 = vmatpush2.xpose.msra.mxu0 0.0
    %322 = vmatprep.subr.mxu0 0.0
    %323 = vmatpush2.xpose.msra.mxu0 0.0
    %324 = vmatprep.subr.mxu0 0.0
    %325 = vmatpush2.xpose.msra.mxu0 0.0
    %326 = vmatprep.subr.mxu0 0.0
    %327 = vmatpush2.xpose.msra.mxu0 0.0
    %328 = vmatprep.subr.mxu0 0.0
    %329 = vmatpush2.xpose.msra.mxu0 0.0
    %330 = vmatprep.subr.mxu0 0.0
    %331 = vmatpush2.xpose.msra.mxu0 0.0
    %332 = vmatprep.subr.mxu0 0.0
    %333 = vmatpush2.xpose.msra.mxu0 0.0
    %334 = vmatprep.subr.mxu0 0.0
    %335 = vmatpush2.xpose.msra.mxu0 0.0
    %336 = vmatprep.subr.mxu0 0.0
    %337 = vmatpush2.xpose.msra.mxu0 0.0
    %338 = vmatprep.subr.mxu0 0.0
    %339 = vmatpush2.xpose.msra.mxu0 0.0
    %340 = vmatprep.mubr.f32.mxu0 0.0
    %341 = vmatmul.mubr.f32.gmra.mxu0 %v272
    %v342 = vpop.f32.mrf.mxu0
    %v343 = vadd.f32 0.0, %v342
    %v344 = vpop.f32.mrf.mxu0
    %345 = vdwg.mxu0
    %346 = vrot.lane.b32.xlu0 %v258, 96
    %v347 = vpop.permute.xlu0 %346
    %v348 = vsel %vm168, %v247, 0
    %v350 = vsel %vm168, %v347, 0
    %352 = vmatprep.subr.mxu0 0.0
    %353 = vmatpush1.xpose.msra.mxu0 0.0
    %354 = vmatprep.subr.mxu0 0.0
    %355 = vmatpush1.xpose.msra.mxu0 0.0
    %356 = vmatprep.subr.mxu0 0.0
    %357 = vmatpush1.xpose.msra.mxu0 0.0
    %358 = vmatprep.subr.mxu0 0.0
    %359 = vmatpush1.xpose.msra.mxu0 0.0
    %360 = vmatprep.subr.mxu0 0.0
    %361 = vmatpush1.xpose.msra.mxu0 0.0
    %362 = vmatprep.subr.mxu0 0.0
    %363 = vmatpush1.xpose.msra.mxu0 0.0
    %364 = vmatprep.subr.mxu0 0.0
    %365 = vmatpush1.xpose.msra.mxu0 0.0
    %366 = vmatprep.subr.mxu0 0.0
    %367 = vmatpush1.xpose.msra.mxu0 0.0
    %368 = vmatprep.subr.mxu0 0.0
    %369 = vmatpush1.xpose.msra.mxu0 0.0
    %370 = vmatprep.subr.mxu0 0.0
    %371 = vmatpush1.xpose.msra.mxu0 0.0
    %372 = vmatprep.subr.mxu0 0.0
    %373 = vmatpush1.xpose.msra.mxu0 0.0
    %374 = vmatprep.subr.mxu0 0.0
    %375 = vmatpush1.xpose.msra.mxu0 0.0
    %376 = vmatprep.subr.mxu0 0.0
    %377 = vmatpush1.xpose.msra.mxu0 0.0
    %378 = vmatprep.subr.mxu0 0.0
    %379 = vmatpush1.xpose.msra.mxu0 0.0
    %380 = vmatprep.subr.mxu0 0.0
    %381 = vmatpush1.xpose.msra.mxu0 0.0
    %382 = vmatprep.subr.mxu0 0.0
    %383 = vmatpush1.xpose.msra.mxu0 %v350
    %384 = vmatprep.subr.mxu0 0.0
    %385 = vmatpush2.xpose.msra.mxu0 0.0
    %386 = vmatprep.subr.mxu0 0.0
    %387 = vmatpush2.xpose.msra.mxu0 0.0
    %388 = vmatprep.subr.mxu0 0.0
    %389 = vmatpush2.xpose.msra.mxu0 0.0
    %390 = vmatprep.subr.mxu0 0.0
    %391 = vmatpush2.xpose.msra.mxu0 0.0
    %392 = vmatprep.subr.mxu0 0.0
    %393 = vmatpush2.xpose.msra.mxu0 0.0
    %394 = vmatprep.subr.mxu0 0.0
    %395 = vmatpush2.xpose.msra.mxu0 0.0
    %396 = vmatprep.subr.mxu0 0.0
    %397 = vmatpush2.xpose.msra.mxu0 0.0
    %398 = vmatprep.subr.mxu0 0.0
    %399 = vmatpush2.xpose.msra.mxu0 0.0
    %400 = vmatprep.subr.mxu0 0.0
    %401 = vmatpush2.xpose.msra.mxu0 0.0
    %402 = vmatprep.subr.mxu0 0.0
    %403 = vmatpush2.xpose.msra.mxu0 0.0
    %404 = vmatprep.subr.mxu0 0.0
    %405 = vmatpush2.xpose.msra.mxu0 0.0
    %406 = vmatprep.subr.mxu0 0.0
    %407 = vmatpush2.xpose.msra.mxu0 0.0
    %408 = vmatprep.subr.mxu0 0.0
    %409 = vmatpush2.xpose.msra.mxu0 0.0
    %410 = vmatprep.subr.mxu0 0.0
    %411 = vmatpush2.xpose.msra.mxu0 0.0
    %412 = vmatprep.subr.mxu0 0.0
    %413 = vmatpush2.xpose.msra.mxu0 0.0
    %414 = vmatprep.subr.mxu0 0.0
    %415 = vmatpush2.xpose.msra.mxu0 0.0
    %416 = vmatprep.mubr.f32.mxu0 0.0
    %417 = vmatmul.mubr.f32.gmra.mxu0 %v348
    %v418 = vpop.f32.mrf.mxu0
    %v419 = vadd.f32 0.0, %v418
    %v420 = vpop.f32.mrf.mxu0
    %421 = vdwg.mxu0
    %v422 = vmul.f32 %v343, 0.17677669
    %v423 = vmul.f32 %v419, 0.17677669
    %vm424 = vcmask 27648
    %v425 = vsel %vm424, %v422, -inf
    %426 = vmax.xlane.f32.xlu0 %v425
    %v427 = vpop.xlane.xlu0 %426
    %v428 = vsel %vm424, %v423, -inf
    %429 = vmax.xlane.f32.xlu0 %v428
    %v430 = vpop.xlane.xlu0 %429
    %v431 = vsub.f32 %v422, %v427
    %v432 = vsub.f32 %v423, %v430
    %v433 = vmul.f32 %v431, 1.442695
    %v434 = vpow.pop %v433
    %v435 = vmul.f32 %v432, 1.442695
    %v436 = vpow.pop %v435
    %v437 = vsel %vm424, %v434, 0.0
    %438 = vadd.xlane.f32.xlu0 %v437
    %v439 = vpop.xlane.xlu0 %438
    %v440 = vsel %vm424, %v436, 0.0
    %441 = vadd.xlane.f32.xlu0 %v440
    %v442 = vpop.xlane.xlu0 %441
    %v443 = vrcp.pop %v439
    %v444 = vrcp.pop %v442
    %v445 = vmul.f32 %v434, %v443
    %v446 = vmul.f32 %v436, %v444
    %447 = vrot.lane.b32.xlu0 %v267, 64
    %v448 = vpop.permute.xlu0 %447
    %vm449 = vcmask 31744
    %v451 = vsel %vm449, %v445, 0
    %vm453 = vcmask 1043456
    %v454 = vsel %vm453, %v448, 0
    %456 = vmatprep.subr.mxu0 0.0
    %457 = vmatpush1.msra.mxu0 0.0
    %458 = vmatprep.subr.mxu0 0.0
    %459 = vmatpush1.msra.mxu0 0.0
    %460 = vmatprep.subr.mxu0 0.0
    %461 = vmatpush1.msra.mxu0 0.0
    %462 = vmatprep.subr.mxu0 0.0
    %463 = vmatpush1.msra.mxu0 0.0
    %464 = vmatprep.subr.mxu0 0.0
    %465 = vmatpush1.msra.mxu0 0.0
    %466 = vmatprep.subr.mxu0 0.0
    %467 = vmatpush1.msra.mxu0 0.0
    %468 = vmatprep.subr.mxu0 0.0
    %469 = vmatpush1.msra.mxu0 0.0
    %470 = vmatprep.subr.mxu0 0.0
    %471 = vmatpush1.msra.mxu0 0.0
    %472 = vmatprep.subr.mxu0 0.0
    %473 = vmatpush1.msra.mxu0 0.0
    %474 = vmatprep.subr.mxu0 0.0
    %475 = vmatpush1.msra.mxu0 0.0
    %476 = vmatprep.subr.mxu0 0.0
    %477 = vmatpush1.msra.mxu0 0.0
    %478 = vmatprep.subr.mxu0 0.0
    %479 = vmatpush1.msra.mxu0 0.0
    %480 = vmatprep.subr.mxu0 0.0
    %481 = vmatpush1.msra.mxu0 0.0
    %482 = vmatprep.subr.mxu0 0.0
    %483 = vmatpush1.msra.mxu0 0.0
    %484 = vmatprep.subr.mxu0 0.0
    %485 = vmatpush1.msra.mxu0 0.0
    %486 = vmatprep.subr.mxu0 0.0
    %487 = vmatpush1.msra.mxu0 %v454
    %488 = vmatprep.subr.mxu0 0.0
    %489 = vmatpush2.msra.mxu0 0.0
    %490 = vmatprep.subr.mxu0 0.0
    %491 = vmatpush2.msra.mxu0 0.0
    %492 = vmatprep.subr.mxu0 0.0
    %493 = vmatpush2.msra.mxu0 0.0
    %494 = vmatprep.subr.mxu0 0.0
    %495 = vmatpush2.msra.mxu0 0.0
    %496 = vmatprep.subr.mxu0 0.0
    %497 = vmatpush2.msra.mxu0 0.0
    %498 = vmatprep.subr.mxu0 0.0
    %499 = vmatpush2.msra.mxu0 0.0
    %500 = vmatprep.subr.mxu0 0.0
    %501 = vmatpush2.msra.mxu0 0.0
    %502 = vmatprep.subr.mxu0 0.0
    %503 = vmatpush2.msra.mxu0 0.0
    %504 = vmatprep.subr.mxu0 0.0
    %505 = vmatpush2.msra.mxu0 0.0
    %506 = vmatprep.subr.mxu0 0.0
    %507 = vmatpush2.msra.mxu0 0.0
    %508 = vmatprep.subr.mxu0 0.0
    %509 = vmatpush2.msra.mxu0 0.0
    %510 = vmatprep.subr.mxu0 0.0
    %511 = vmatpush2.msra.mxu0 0.0
    %512 = vmatprep.subr.mxu0 0.0
    %513 = vmatpush2.msra.mxu0 0.0
    %514 = vmatprep.subr.mxu0 0.0
    %515 = vmatpush2.msra.mxu0 0.0
    %516 = vmatprep.subr.mxu0 0.0
    %517 = vmatpush2.msra.mxu0 0.0
    %518 = vmatprep.subr.mxu0 0.0
    %519 = vmatpush2.msra.mxu0 0.0
    %520 = vmatprep.mubr.f32.mxu0 0.0
    %521 = vmatmul.mubr.f32.gmra.mxu0 %v451
    %v522 = vpop.f32.mrf.mxu0
    %v523 = vadd.f32 0.0, %v522
    %v524 = vpop.f32.mrf.mxu0
    %525 = vdwg.mxu0
    %526 = vrot.lane.b32.xlu0 %v269, 64
    %v527 = vpop.permute.xlu0 %526
    %v529 = vsel %vm449, %v446, 0
    %v531 = vsel %vm453, %v527, 0
    %533 = vmatprep.subr.mxu0 0.0
    %534 = vmatpush1.msra.mxu0 0.0
    %535 = vmatprep.subr.mxu0 0.0
    %536 = vmatpush1.msra.mxu0 0.0
    %537 = vmatprep.subr.mxu0 0.0
    %538 = vmatpush1.msra.mxu0 0.0
    %539 = vmatprep.subr.mxu0 0.0
    %540 = vmatpush1.msra.mxu0 0.0
    %541 = vmatprep.subr.mxu0 0.0
    %542 = vmatpush1.msra.mxu0 0.0
    %543 = vmatprep.subr.mxu0 0.0
    %544 = vmatpush1.msra.mxu0 0.0
    %545 = vmatprep.subr.mxu0 0.0
    %546 = vmatpush1.msra.mxu0 0.0
    %547 = vmatprep.subr.mxu0 0.0
    %548 = vmatpush1.msra.mxu0 0.0
    %549 = vmatprep.subr.mxu0 0.0
    %550 = vmatpush1.msra.mxu0 0.0
    %551 = vmatprep.subr.mxu0 0.0
    %552 = vmatpush1.msra.mxu0 0.0
    %553 = vmatprep.subr.mxu0 0.0
    %554 = vmatpush1.msra.mxu0 0.0
    %555 = vmatprep.subr.mxu0 0.0
    %556 = vmatpush1.msra.mxu0 0.0
    %557 = vmatprep.subr.mxu0 0.0
    %558 = vmatpush1.msra.mxu0 0.0
    %559 = vmatprep.subr.mxu0 0.0
    %560 = vmatpush1.msra.mxu0 0.0
    %561 = vmatprep.subr.mxu0 0.0
    %562 = vmatpush1.msra.mxu0 0.0
    %563 = vmatprep.subr.mxu0 0.0
    %564 = vmatpush1.msra.mxu0 %v531
    %565 = vmatprep.subr.mxu0 0.0
    %566 = vmatpush2.msra.mxu0 0.0
    %567 = vmatprep.subr.mxu0 0.0
    %568 = vmatpush2.msra.mxu0 0.0
    %569 = vmatprep.subr.mxu0 0.0
    %570 = vmatpush2.msra.mxu0 0.0
    %571 = vmatprep.subr.mxu0 0.0
    %572 = vmatpush2.msra.mxu0 0.0
    %573 = vmatprep.subr.mxu0 0.0
    %574 = vmatpush2.msra.mxu0 0.0
    %575 = vmatprep.subr.mxu0 0.0
    %576 = vmatpush2.msra.mxu0 0.0
    %577 = vmatprep.subr.mxu0 0.0
    %578 = vmatpush2.msra.mxu0 0.0
    %579 = vmatprep.subr.mxu0 0.0
    %580 = vmatpush2.msra.mxu0 0.0
    %581 = vmatprep.subr.mxu0 0.0
    %582 = vmatpush2.msra.mxu0 0.0
    %583 = vmatprep.subr.mxu0 0.0
    %584 = vmatpush2.msra.mxu0 0.0
    %585 = vmatprep.subr.mxu0 0.0
    %586 = vmatpush2.msra.mxu0 0.0
    %587 = vmatprep.subr.mxu0 0.0
    %588 = vmatpush2.msra.mxu0 0.0
    %589 = vmatprep.subr.mxu0 0.0
    %590 = vmatpush2.msra.mxu0 0.0
    %591 = vmatprep.subr.mxu0 0.0
    %592 = vmatpush2.msra.mxu0 0.0
    %593 = vmatprep.subr.mxu0 0.0
    %594 = vmatpush2.msra.mxu0 0.0
    %595 = vmatprep.subr.mxu0 0.0
    %596 = vmatpush2.msra.mxu0 0.0
    %597 = vmatprep.mubr.f32.mxu0 0.0
    %598 = vmatmul.mubr.f32.gmra.mxu0 %v529
    %v599 = vpop.f32.mrf.mxu0
    %v600 = vadd.f32 0.0, %v599
    %v601 = vpop.f32.mrf.mxu0
    %602 = vdwg.mxu0
    %v604 = vlaneseq
    %v605 = vshrl.u32 %v604, 7
    %v606 = vsub.s32 0, %v605
    %v607 = vrot.slane %v102, %v606
    %v611 = vcombine.low %v523, %v600
    %v612 = vsel %vm168, %v611, 0
    %614 = vmatprep.subr.mxu0 0.0
    %615 = vmatpush1.msra.mxu0 0.0
    %616 = vmatprep.subr.mxu0 0.0
    %617 = vmatpush1.msra.mxu0 0.0
    %618 = vmatprep.subr.mxu0 0.0
    %619 = vmatpush1.msra.mxu0 0.0
    %620 = vmatprep.subr.mxu0 0.0
    %621 = vmatpush1.msra.mxu0 0.0
    %622 = vmatprep.subr.mxu0 0.0
    %623 = vmatpush1.msra.mxu0 0.0
    %624 = vmatprep.subr.mxu0 0.0
    %625 = vmatpush1.msra.mxu0 0.0
    %626 = vmatprep.subr.mxu0 0.0
    %627 = vmatpush1.msra.mxu0 0.0
    %628 = vmatprep.subr.mxu0 0.0
    %629 = vmatpush1.msra.mxu0 0.0
    %630 = vmatprep.subr.mxu0 0.0
    %631 = vmatpush1.msra.mxu0 0.0
    %632 = vmatprep.subr.mxu0 0.0
    %633 = vmatpush1.msra.mxu0 0.0
    %634 = vmatprep.subr.mxu0 0.0
    %635 = vmatpush1.msra.mxu0 0.0
    %636 = vmatprep.subr.mxu0 0.0
    %637 = vmatpush1.msra.mxu0 0.0
    %638 = vmatprep.subr.mxu0 0.0
    %639 = vmatpush1.msra.mxu0 %v101
    %640 = vmatprep.subr.mxu0 0.0
    %641 = vmatpush1.msra.mxu0 %v100
    %642 = vmatprep.subr.mxu0 0.0
    %643 = vmatpush1.msra.mxu0 %v99
    %644 = vmatprep.subr.mxu0 0.0
    %645 = vmatpush1.msra.mxu0 %v98
    %646 = vmatprep.subr.mxu0 0.0
    %647 = vmatpush2.msra.mxu0 0.0
    %648 = vmatprep.subr.mxu0 0.0
    %649 = vmatpush2.msra.mxu0 0.0
    %650 = vmatprep.subr.mxu0 0.0
    %651 = vmatpush2.msra.mxu0 0.0
    %652 = vmatprep.subr.mxu0 0.0
    %653 = vmatpush2.msra.mxu0 0.0
    %654 = vmatprep.subr.mxu0 0.0
    %655 = vmatpush2.msra.mxu0 0.0
    %656 = vmatprep.subr.mxu0 0.0
    %657 = vmatpush2.msra.mxu0 0.0
    %658 = vmatprep.subr.mxu0 0.0
    %659 = vmatpush2.msra.mxu0 0.0
    %660 = vmatprep.subr.mxu0 0.0
    %661 = vmatpush2.msra.mxu0 0.0
    %662 = vmatprep.subr.mxu0 0.0
    %663 = vmatpush2.msra.mxu0 0.0
    %664 = vmatprep.subr.mxu0 0.0
    %665 = vmatpush2.msra.mxu0 0.0
    %666 = vmatprep.subr.mxu0 0.0
    %667 = vmatpush2.msra.mxu0 0.0
    %668 = vmatprep.subr.mxu0 0.0
    %669 = vmatpush2.msra.mxu0 0.0
    %670 = vmatprep.subr.mxu0 0.0
    %671 = vmatpush2.msra.mxu0 0.0
    %672 = vmatprep.subr.mxu0 0.0
    %673 = vmatpush2.msra.mxu0 0.0
    %674 = vmatprep.subr.mxu0 0.0
    %675 = vmatpush2.msra.mxu0 0.0
    %676 = vmatprep.subr.mxu0 0.0
    %677 = vmatpush2.msra.mxu0 0.0
    %678 = vmatprep.mubr.f32.mxu0 0.0
    %679 = vmatmul.mubr.f32.gmra.mxu0 %v612
    %v680 = vpop.f32.mrf.mxu0
    %v681 = vadd.f32 %v607, %v680
    %v682 = vpop.f32.mrf.mxu0
    %683 = vdwg.mxu0
    %v685 = vcombine.high %v681, %v681
    %v687 = vadd.f32 %v90, %v681
    %v688 = vadd.f32 %v91, %v685
    %v689 = vsel %vm125, %v687, 0.0
    %690 = vadd.xlane.f32.xlu0 %v689
    %v691 = vpop.xlane.xlu0 %690
    %v692 = vsel %vm125, %v688, 0.0
    %693 = vadd.xlane.f32.xlu0 %v692
    %v694 = vpop.xlane.xlu0 %693
    %v695 = vmul.f32 %v691, %v132
    %v696 = vmul.f32 %v694, %v132
    %v697 = vsub.f32 %v687, %v695
    %v698 = vsub.f32 %v688, %v696
    %v699 = vmul.f32 %v697, %v697
    %v700 = vmul.f32 %v698, %v698
    %v701 = vsel %vm125, %v699, 0.0
    %702 = vadd.xlane.f32.xlu0 %v701
    %v703 = vpop.xlane.xlu0 %702
    %v704 = vsel %vm125, %v700, 0.0
    %705 = vadd.xlane.f32.xlu0 %v704
    %v706 = vpop.xlane.xlu0 %705
    %v707 = vmul.f32 %v703, %v132
    %v708 = vmul.f32 %v706, %v132
    %v709 = vadd.f32 %v707, 1e-06
    %v710 = vadd.f32 %v708, 1e-06
    %v711 = vrsqrt.pop %v709
    %v712 = vrsqrt.pop %v710
    %v713 = vmul.f32 %v697, %v711
    %v714 = vmul.f32 %v698, %v712
    %v715 = vlaneseq
    %v716 = vshrl.u32 %v715, 7
    %v717 = vsub.s32 2, %v716
    %v718 = vrot.slane %v92, %v717
    %v719 = vmul.f32 %v713, %v718
    %v720 = vmul.f32 %v714, %v718
    %v721 = vlaneseq
    %v722 = vshrl.u32 %v721, 7
    %v723 = vsub.s32 3, %v722
    %v724 = vrot.slane %v92, %v723
    %v725 = vadd.f32 %v719, %v724
    %v726 = vadd.f32 %v720, %v724
    %v728 = vlaneseq
    %v729 = vshrl.u32 %v728, 7
    %v730 = vsub.s32 0, %v729
    %v731 = vrot.slane %v107, %v730
    %v735 = vcombine.low %v725, %v726
    %v736 = vsel %vm168, %v735, 0
    %738 = vmatprep.subr.mxu0 0.0
    %739 = vmatpush1.msra.mxu0 0.0
    %740 = vmatprep.subr.mxu0 0.0
    %741 = vmatpush1.msra.mxu0 0.0
    %742 = vmatprep.subr.mxu0 0.0
    %743 = vmatpush1.msra.mxu0 0.0
    %744 = vmatprep.subr.mxu0 0.0
    %745 = vmatpush1.msra.mxu0 0.0
    %746 = vmatprep.subr.mxu0 0.0
    %747 = vmatpush1.msra.mxu0 0.0
    %748 = vmatprep.subr.mxu0 0.0
    %749 = vmatpush1.msra.mxu0 0.0
    %750 = vmatprep.subr.mxu0 0.0
    %751 = vmatpush1.msra.mxu0 0.0
    %752 = vmatprep.subr.mxu0 0.0
    %753 = vmatpush1.msra.mxu0 0.0
    %754 = vmatprep.subr.mxu0 0.0
    %755 = vmatpush1.msra.mxu0 0.0
    %756 = vmatprep.subr.mxu0 0.0
    %757 = vmatpush1.msra.mxu0 0.0
    %758 = vmatprep.subr.mxu0 0.0
    %759 = vmatpush1.msra.mxu0 0.0
    %760 = vmatprep.subr.mxu0 0.0
    %761 = vmatpush1.msra.mxu0 0.0
    %762 = vmatprep.subr.mxu0 0.0
    %763 = vmatpush1.msra.mxu0 %v106
    %764 = vmatprep.subr.mxu0 0.0
    %765 = vmatpush1.msra.mxu0 %v105
    %766 = vmatprep.subr.mxu0 0.0
    %767 = vmatpush1.msra.mxu0 %v104
    %768 = vmatprep.subr.mxu0 0.0
    %769 = vmatpush1.msra.mxu0 %v103
    %770 = vmatprep.subr.mxu0 0.0
    %771 = vmatpush2.msra.mxu0 0.0
    %772 = vmatprep.subr.mxu0 0.0
    %773 = vmatpush2.msra.mxu0 0.0
    %774 = vmatprep.subr.mxu0 0.0
    %775 = vmatpush2.msra.mxu0 0.0
    %776 = vmatprep.subr.mxu0 0.0
    %777 = vmatpush2.msra.mxu0 0.0
    %778 = vmatprep.subr.mxu0 0.0
    %779 = vmatpush2.msra.mxu0 0.0
    %780 = vmatprep.subr.mxu0 0.0
    %781 = vmatpush2.msra.mxu0 0.0
    %782 = vmatprep.subr.mxu0 0.0
    %783 = vmatpush2.msra.mxu0 0.0
    %784 = vmatprep.subr.mxu0 0.0
    %785 = vmatpush2.msra.mxu0 0.0
    %786 = vmatprep.subr.mxu0 0.0
    %787 = vmatpush2.msra.mxu0 0.0
    %788 = vmatprep.subr.mxu0 0.0
    %789 = vmatpush2.msra.mxu0 0.0
    %790 = vmatprep.subr.mxu0 0.0
    %791 = vmatpush2.msra.mxu0 0.0
    %792 = vmatprep.subr.mxu0 0.0
    %793 = vmatpush2.msra.mxu0 0.0
    %794 = vmatprep.subr.mxu0 0.0
    %795 = vmatpush2.msra.mxu0 0.0
    %796 = vmatprep.subr.mxu0 0.0
    %797 = vmatpush2.msra.mxu0 0.0
    %798 = vmatprep.subr.mxu0 0.0
    %799 = vmatpush2.msra.mxu0 0.0
    %800 = vmatprep.subr.mxu0 0.0
    %801 = vmatpush2.msra.mxu0 0.0
    %802 = vmatprep.mubr.f32.mxu0 0.0
    %803 = vmatmul.mubr.f32.gmra.mxu0 %v736
    %v804 = vpop.f32.mrf.mxu0
    %v805 = vadd.f32 %v731, %v804
    %v806 = vpop.f32.mrf.mxu0
    %807 = vdwg.mxu0
    %v808 = vmul.f32 %v805, %v805
    %v809 = vmul.f32 %v805, %v808
    %v810 = vmul.f32 %v809, 0.044715
    %v811 = vadd.f32 %v805, %v810
    %v812 = vmul.f32 %v811, 0.7978846
    %v813 = vtanh.pop %v812
    %v814 = vadd.f32 %v813, 1.0
    %v815 = vmul.f32 %v814, 0.5
    %v816 = vmul.f32 %v805, %v815
    %v818 = vlaneseq
    %v819 = vshrl.u32 %v818, 7
    %v820 = vsub.s32 0, %v819
    %v821 = vrot.slane %v124, %v820
    %823 = vmatprep.subr.mxu0 0.0
    %824 = vmatpush1.msra.mxu0 %v123
    %825 = vmatprep.subr.mxu0 0.0
    %826 = vmatpush1.msra.mxu0 %v122
    %827 = vmatprep.subr.mxu0 0.0
    %828 = vmatpush1.msra.mxu0 %v121
    %829 = vmatprep.subr.mxu0 0.0
    %830 = vmatpush1.msra.mxu0 %v120
    %831 = vmatprep.subr.mxu0 0.0
    %832 = vmatpush1.msra.mxu0 %v119
    %833 = vmatprep.subr.mxu0 0.0
    %834 = vmatpush1.msra.mxu0 %v118
    %835 = vmatprep.subr.mxu0 0.0
    %836 = vmatpush1.msra.mxu0 %v117
    %837 = vmatprep.subr.mxu0 0.0
    %838 = vmatpush1.msra.mxu0 %v116
    %839 = vmatprep.subr.mxu0 0.0
    %840 = vmatpush1.msra.mxu0 %v115
    %841 = vmatprep.subr.mxu0 0.0
    %842 = vmatpush1.msra.mxu0 %v114
    %843 = vmatprep.subr.mxu0 0.0
    %844 = vmatpush1.msra.mxu0 %v113
    %845 = vmatprep.subr.mxu0 0.0
    %846 = vmatpush1.msra.mxu0 %v112
    %847 = vmatprep.subr.mxu0 0.0
    %848 = vmatpush1.msra.mxu0 %v111
    %849 = vmatprep.subr.mxu0 0.0
    %850 = vmatpush1.msra.mxu0 %v110
    %851 = vmatprep.subr.mxu0 0.0
    %852 = vmatpush1.msra.mxu0 %v109
    %853 = vmatprep.subr.mxu0 0.0
    %854 = vmatpush1.msra.mxu0 %v108
    %855 = vmatprep.subr.mxu0 0.0
    %856 = vmatpush2.msra.mxu0 0.0
    %857 = vmatprep.subr.mxu0 0.0
    %858 = vmatpush2.msra.mxu0 0.0
    %859 = vmatprep.subr.mxu0 0.0
    %860 = vmatpush2.msra.mxu0 0.0
    %861 = vmatprep.subr.mxu0 0.0
    %862 = vmatpush2.msra.mxu0 0.0
    %863 = vmatprep.subr.mxu0 0.0
    %864 = vmatpush2.msra.mxu0 0.0
    %865 = vmatprep.subr.mxu0 0.0
    %866 = vmatpush2.msra.mxu0 0.0
    %867 = vmatprep.subr.mxu0 0.0
    %868 = vmatpush2.msra.mxu0 0.0
    %869 = vmatprep.subr.mxu0 0.0
    %870 = vmatpush2.msra.mxu0 0.0
    %871 = vmatprep.subr.mxu0 0.0
    %872 = vmatpush2.msra.mxu0 0.0
    %873 = vmatprep.subr.mxu0 0.0
    %874 = vmatpush2.msra.mxu0 0.0
    %875 = vmatprep.subr.mxu0 0.0
    %876 = vmatpush2.msra.mxu0 0.0
    %877 = vmatprep.subr.mxu0 0.0
    %878 = vmatpush2.msra.mxu0 0.0
    %879 = vmatprep.subr.mxu0 0.0
    %880 = vmatpush2.msra.mxu0 0.0
    %881 = vmatprep.subr.mxu0 0.0
    %882 = vmatpush2.msra.mxu0 0.0
    %883 = vmatprep.subr.mxu0 0.0
    %884 = vmatpush2.msra.mxu0 0.0
    %885 = vmatprep.subr.mxu0 0.0
    %886 = vmatpush2.msra.mxu0 0.0
    %887 = vmatprep.mubr.f32.mxu0 0.0
    %888 = vmatmul.mubr.f32.gmra.mxu0 %v816
    %v889 = vpop.f32.mrf.mxu0
    %v890 = vadd.f32 %v821, %v889
    %v891 = vpop.f32.mrf.mxu0
    %892 = vdwg.mxu0
    %v894 = vcombine.high %v890, %v890
    %v896 = vadd.f32 %v687, %v890
    %v897 = vadd.f32 %v688, %v894
    %v898 = vld [vmem:[%s11] sm:$0x3]
    %v899 = vsel %vm125, %v896, 0.0
    %900 = vadd.xlane.f32.xlu0 %v899
    %v901 = vpop.xlane.xlu0 %900
    %v902 = vsel %vm125, %v897, 0.0
    %903 = vadd.xlane.f32.xlu0 %v902
    %v904 = vpop.xlane.xlu0 %903
    %v905 = vmul.f32 %v901, %v132
    %v906 = vmul.f32 %v904, %v132
    %v907 = vsub.f32 %v896, %v905
    %v908 = vsub.f32 %v897, %v906
    %v909 = vmul.f32 %v907, %v907
    %v910 = vmul.f32 %v908, %v908
    %v911 = vsel %vm125, %v909, 0.0
    %912 = vadd.xlane.f32.xlu0 %v911
    %v913 = vpop.xlane.xlu0 %912
    %v914 = vsel %vm125, %v910, 0.0
    %915 = vadd.xlane.f32.xlu0 %v914
    %v916 = vpop.xlane.xlu0 %915
    %v917 = vmul.f32 %v913, %v132
    %v918 = vmul.f32 %v916, %v132
    %v919 = vadd.f32 %v917, 1e-06
    %v920 = vadd.f32 %v918, 1e-06
    %v921 = vrsqrt.pop %v919
    %v922 = vrsqrt.pop %v920
    %v923 = vmul.f32 %v907, %v921
    %v924 = vmul.f32 %v908, %v922
    %v925 = vlaneseq
    %v926 = vshrl.u32 %v925, 7
    %v927 = vsub.s32 0, %v926
    %v928 = vrot.slane %v898, %v927
    %v929 = vmul.f32 %v923, %v928
    %v930 = vmul.f32 %v924, %v928
    %v931 = vlaneseq
    %v932 = vshrl.u32 %v931, 7
    %v933 = vsub.s32 1, %v932
    %v934 = vrot.slane %v898, %v933
    %v935 = vadd.f32 %v929, %v934
    %v936 = vadd.f32 %v930, %v934
    %v937 = vld [vmem:[%s12] sm:$0xff]
    %v938 = vld [vmem:[%s12 + $0x8] sm:$0xff]
    %v939 = vld [vmem:[%s12 + $0x10] sm:$0xff]
    %v940 = vld [vmem:[%s12 + $0x18] sm:$0xff]
    %v941 = vld [vmem:[%s13] sm:$0x1]
    %v943 = vlaneseq
    %v944 = vshrl.u32 %v943, 7
    %v945 = vsub.s32 0, %v944
    %v946 = vrot.slane %v941, %v945
    %v950 = vcombine.low %v935, %v936
    %v951 = vsel %vm168, %v950, 0
    %953 = vmatprep.subr.mxu0 0.0
    %954 = vmatpush1.msra.mxu0 0.0
    %955 = vmatprep.subr.mxu0 0.0
    %956 = vmatpush1.msra.mxu0 0.0
    %957 = vmatprep.subr.mxu0 0.0
    %958 = vmatpush1.msra.mxu0 0.0
    %959 = vmatprep.subr.mxu0 0.0
    %960 = vmatpush1.msra.mxu0 0.0
    %961 = vmatprep.subr.mxu0 0.0
    %962 = vmatpush1.msra.mxu0 0.0
    %963 = vmatprep.subr.mxu0 0.0
    %964 = vmatpush1.msra.mxu0 0.0
    %965 = vmatprep.subr.mxu0 0.0
    %966 = vmatpush1.msra.mxu0 0.0
    %967 = vmatprep.subr.mxu0 0.0
    %968 = vmatpush1.msra.mxu0 0.0
    %969 = vmatprep.subr.mxu0 0.0
    %970 = vmatpush1.msra.mxu0 0.0
    %971 = vmatprep.subr.mxu0 0.0
    %972 = vmatpush1.msra.mxu0 0.0
    %973 = vmatprep.subr.mxu0 0.0
    %974 = vmatpush1.msra.mxu0 0.0
    %975 = vmatprep.subr.mxu0 0.0
    %976 = vmatpush1.msra.mxu0 0.0
    %977 = vmatprep.subr.mxu0 0.0
    %978 = vmatpush1.msra.mxu0 %v940
    %979 = vmatprep.subr.mxu0 0.0
    %980 = vmatpush1.msra.mxu0 %v939
    %981 = vmatprep.subr.mxu0 0.0
    %982 = vmatpush1.msra.mxu0 %v938
    %983 = vmatprep.subr.mxu0 0.0
    %984 = vmatpush1.msra.mxu0 %v937
    %985 = vmatprep.subr.mxu0 0.0
    %986 = vmatpush2.msra.mxu0 0.0
    %987 = vmatprep.subr.mxu0 0.0
    %988 = vmatpush2.msra.mxu0 0.0
    %989 = vmatprep.subr.mxu0 0.0
    %990 = vmatpush2.msra.mxu0 0.0
    %991 = vmatprep.subr.mxu0 0.0
    %992 = vmatpush2.msra.mxu0 0.0
    %993 = vmatprep.subr.mxu0 0.0
    %994 = vmatpush2.msra.mxu0 0.0
    %995 = vmatprep.subr.mxu0 0.0
    %996 = vmatpush2.msra.mxu0 0.0
    %997 = vmatprep.subr.mxu0 0.0
    %998 = vmatpush2.msra.mxu0 0.0
    %999 = vmatprep.subr.mxu0 0.0
    %1000 = vmatpush2.msra.mxu0 0.0
    %1001 = vmatprep.subr.mxu0 0.0
    %1002 = vmatpush2.msra.mxu0 0.0
    %1003 = vmatprep.subr.mxu0 0.0
    %1004 = vmatpush2.msra.mxu0 0.0
    %1005 = vmatprep.subr.mxu0 0.0
    %1006 = vmatpush2.msra.mxu0 0.0
    %1007 = vmatprep.subr.mxu0 0.0
    %1008 = vmatpush2.msra.mxu0 0.0
    %1009 = vmatprep.subr.mxu0 0.0
    %1010 = vmatpush2.msra.mxu0 0.0
    %1011 = vmatprep.subr.mxu0 0.0
    %1012 = vmatpush2.msra.mxu0 0.0
    %1013 = vmatprep.subr.mxu0 0.0
    %1014 = vmatpush2.msra.mxu0 0.0
    %1015 = vmatprep.subr.mxu0 0.0
    %1016 = vmatpush2.msra.mxu0 0.0
    %1017 = vmatprep.mubr.f32.mxu0 0.0
    %1018 = vmatmul.mubr.f32.gmra.mxu0 %v951
    %v1019 = vpop.f32.mrf.mxu0
    %v1020 = vadd.f32 %v946, %v1019
    %v1021 = vpop.f32.mrf.mxu0
    %1022 = vdwg.mxu0
    %v1024 = vcombine.high %v1020, %v1020
    %v1025 = vld [vmem:[%s1] sm:$0x3]
    %v1026 = vlaneseq
    %v1027 = vand.u32 %v1026, 127
    %v1028 = vlaneseq
    %v1029 = vshrl.u32 %v1028, 7
    %v1030 = vsub.s32 0, %v1029
    %v1031 = vrot.slane %v1025, %v1030
    %1033 = vbcast.lane.b32.xlu0 %v1031, 256
    %v1034 = vpop.permute.xlu0 %1033
    %v1035 = vlaneseq
    %v1036 = vshrl.u32 %v1035, 7
    %v1037 = vsub.s32 1, %v1036
    %v1038 = vrot.slane %v1025, %v1037
    %1040 = vbcast.lane.b32.xlu0 %v1038, 256
    %v1041 = vpop.permute.xlu0 %1040
    %vm1042 = vcmp.eq.s32.totalorder %v1034, %v1027
    %vm1043 = vcmp.eq.s32.totalorder %v1041, %v1027
    %v1044 = vsel %vm1042, 1, 0
    %v1045 = vsel %vm1043, 1, 0
    %v1046 = vcvt.s32.f32 %v1044
    %v1047 = vcvt.s32.f32 %v1045
    %vm1048 = vcmp.ge.s32.totalorder %v1025, 4
    %v1049 = vsel %vm1048, 1, 0
    %v1050 = vcvt.s32.f32 %v1049
    %v1051 = vlaneseq
    %v1052 = vshrl.u32 %v1051, 7
    %v1053 = vsub.s32 0, %v1052
    %v1054 = vrot.slane %v1050, %v1053
    %1056 = vbcast.lane.b32.xlu0 %v1054, 256
    %v1057 = vpop.permute.xlu0 %1056
    %v1058 = vlaneseq
    %v1059 = vshrl.u32 %v1058, 7
    %v1060 = vsub.s32 1, %v1059
    %v1061 = vrot.slane %v1050, %v1060
    %1063 = vbcast.lane.b32.xlu0 %v1061, 256
    %v1064 = vpop.permute.xlu0 %1063
    %v1065 = vld [vmem:[%s14] sm:$0x1]
    %v1067 = vlaneseq
    %v1068 = vshrl.u32 %v1067, 7
    %v1069 = vsub.s32 0, %v1068
    %v1070 = vrot.slane %v1065, %v1069
    %v1072 = vmul.f32 %v1057, %v1070
    %v1073 = vmul.f32 %v1064, %v1070
    %v1075 = vsel %vm449, %v1046, 0
    %v1077 = vsel %vm453, %v1020, 0
    %1079 = vmatprep.subr.mxu0 0.0
    %1080 = vmatpush1.msra.mxu0 0.0
    %1081 = vmatprep.subr.mxu0 0.0
    %1082 = vmatpush1.msra.mxu0 0.0
    %1083 = vmatprep.subr.mxu0 0.0
    %1084 = vmatpush1.msra.mxu0 0.0
    %1085 = vmatprep.subr.mxu0 0.0
    %1086 = vmatpush1.msra.mxu0 0.0
    %1087 = vmatprep.subr.mxu0 0.0
    %1088 = vmatpush1.msra.mxu0 0.0
    %1089 = vmatprep.subr.mxu0 0.0
    %1090 = vmatpush1.msra.mxu0 0.0
    %1091 = vmatprep.subr.mxu0 0.0
    %1092 = vmatpush1.msra.mxu0 0.0
    %1093 = vmatprep.subr.mxu0 0.0
    %1094 = vmatpush1.msra.mxu0 0.0
    %1095 = vmatprep.subr.mxu0 0.0
    %1096 = vmatpush1.msra.mxu0 0.0
    %1097 = vmatprep.subr.mxu0 0.0
    %1098 = vmatpush1.msra.mxu0 0.0
    %1099 = vmatprep.subr.mxu0 0.0
    %1100 = vmatpush1.msra.mxu0 0.0
    %1101 = vmatprep.subr.mxu0 0.0
    %1102 = vmatpush1.msra.mxu0 0.0
    %1103 = vmatprep.subr.mxu0 0.0
    %1104 = vmatpush1.msra.mxu0 0.0
    %1105 = vmatprep.subr.mxu0 0.0
    %1106 = vmatpush1.msra.mxu0 0.0
    %1107 = vmatprep.subr.mxu0 0.0
    %1108 = vmatpush1.msra.mxu0 0.0
    %1109 = vmatprep.subr.mxu0 0.0
    %1110 = vmatpush1.msra.mxu0 %v1077
    %1111 = vmatprep.subr.mxu0 0.0
    %1112 = vmatpush2.msra.mxu0 0.0
    %1113 = vmatprep.subr.mxu0 0.0
    %1114 = vmatpush2.msra.mxu0 0.0
    %1115 = vmatprep.subr.mxu0 0.0
    %1116 = vmatpush2.msra.mxu0 0.0
    %1117 = vmatprep.subr.mxu0 0.0
    %1118 = vmatpush2.msra.mxu0 0.0
    %1119 = vmatprep.subr.mxu0 0.0
    %1120 = vmatpush2.msra.mxu0 0.0
    %1121 = vmatprep.subr.mxu0 0.0
    %1122 = vmatpush2.msra.mxu0 0.0
    %1123 = vmatprep.subr.mxu0 0.0
    %1124 = vmatpush2.msra.mxu0 0.0
    %1125 = vmatprep.subr.mxu0 0.0
    %1126 = vmatpush2.msra.mxu0 0.0
    %1127 = vmatprep.subr.mxu0 0.0
    %1128 = vmatpush2.msra.mxu0 0.0
    %1129 = vmatprep.subr.mxu0 0.0
    %1130 = vmatpush2.msra.mxu0 0.0
    %1131 = vmatprep.subr.mxu0 0.0
    %1132 = vmatpush2.msra.mxu0 0.0
    %1133 = vmatprep.subr.mxu0 0.0
    %1134 = vmatpush2.msra.mxu0 0.0
    %1135 = vmatprep.subr.mxu0 0.0
    %1136 = vmatpush2.msra.mxu0 0.0
    %1137 = vmatprep.subr.mxu0 0.0
    %1138 = vmatpush2.msra.mxu0 0.0
    %1139 = vmatprep.subr.mxu0 0.0
    %1140 = vmatpush2.msra.mxu0 0.0
    %1141 = vmatprep.subr.mxu0 0.0
    %1142 = vmatpush2.msra.mxu0 0.0
    %1143 = vmatprep.mubr.f32.mxu0 0.0
    %1144 = vmatmul.mubr.f32.gmra.mxu0 %v1075
    %v1145 = vpop.f32.mrf.mxu0
    %v1146 = vadd.f32 %v1072, %v1145
    %v1147 = vpop.f32.mrf.mxu0
    %1148 = vdwg.mxu0
    %v1150 = vsel %vm449, %v1047, 0
    %v1152 = vsel %vm453, %v1024, 0
    %1154 = vmatprep.subr.mxu0 0.0
    %1155 = vmatpush1.msra.mxu0 0.0
    %1156 = vmatprep.subr.mxu0 0.0
    %1157 = vmatpush1.msra.mxu0 0.0
    %1158 = vmatprep.subr.mxu0 0.0
    %1159 = vmatpush1.msra.mxu0 0.0
    %1160 = vmatprep.subr.mxu0 0.0
    %1161 = vmatpush1.msra.mxu0 0.0
    %1162 = vmatprep.subr.mxu0 0.0
    %1163 = vmatpush1.msra.mxu0 0.0
    %1164 = vmatprep.subr.mxu0 0.0
    %1165 = vmatpush1.msra.mxu0 0.0
    %1166 = vmatprep.subr.mxu0 0.0
    %1167 = vmatpush1.msra.mxu0 0.0
    %1168 = vmatprep.subr.mxu0 0.0
    %1169 = vmatpush1.msra.mxu0 0.0
    %1170 = vmatprep.subr.mxu0 0.0
    %1171 = vmatpush1.msra.mxu0 0.0
    %1172 = vmatprep.subr.mxu0 0.0
    %1173 = vmatpush1.msra.mxu0 0.0
    %1174 = vmatprep.subr.mxu0 0.0
    %1175 = vmatpush1.msra.mxu0 0.0
    %1176 = vmatprep.subr.mxu0 0.0
    %1177 = vmatpush1.msra.mxu0 0.0
    %1178 = vmatprep.subr.mxu0 0.0
    %1179 = vmatpush1.msra.mxu0 0.0
    %1180 = vmatprep.subr.mxu0 0.0
    %1181 = vmatpush1.msra.mxu0 0.0
    %1182 = vmatprep.subr.mxu0 0.0
    %1183 = vmatpush1.msra.mxu0 0.0
    %1184 = vmatprep.subr.mxu0 0.0
    %1185 = vmatpush1.msra.mxu0 %v1152
    %1186 = vmatprep.subr.mxu0 0.0
    %1187 = vmatpush2.msra.mxu0 0.0
    %1188 = vmatprep.subr.mxu0 0.0
    %1189 = vmatpush2.msra.mxu0 0.0
    %1190 = vmatprep.subr.mxu0 0.0
    %1191 = vmatpush2.msra.mxu0 0.0
    %1192 = vmatprep.subr.mxu0 0.0
    %1193 = vmatpush2.msra.mxu0 0.0
    %1194 = vmatprep.subr.mxu0 0.0
    %1195 = vmatpush2.msra.mxu0 0.0
    %1196 = vmatprep.subr.mxu0 0.0
    %1197 = vmatpush2.msra.mxu0 0.0
    %1198 = vmatprep.subr.mxu0 0.0
    %1199 = vmatpush2.msra.mxu0 0.0
    %1200 = vmatprep.subr.mxu0 0.0
    %1201 = vmatpush2.msra.mxu0 0.0
    %1202 = vmatprep.subr.mxu0 0.0
    %1203 = vmatpush2.msra.mxu0 0.0
    %1204 = vmatprep.subr.mxu0 0.0
    %1205 = vmatpush2.msra.mxu0 0.0
    %1206 = vmatprep.subr.mxu0 0.0
    %1207 = vmatpush2.msra.mxu0 0.0
    %1208 = vmatprep.subr.mxu0 0.0
    %1209 = vmatpush2.msra.mxu0 0.0
    %1210 = vmatprep.subr.mxu0 0.0
    %1211 = vmatpush2.msra.mxu0 0.0
    %1212 = vmatprep.subr.mxu0 0.0
    %1213 = vmatpush2.msra.mxu0 0.0
    %1214 = vmatprep.subr.mxu0 0.0
    %1215 = vmatpush2.msra.mxu0 0.0
    %1216 = vmatprep.subr.mxu0 0.0
    %1217 = vmatpush2.msra.mxu0 0.0
    %1218 = vmatprep.mubr.f32.mxu0 0.0
    %1219 = vmatmul.mubr.f32.gmra.mxu0 %v1150
    %v1220 = vpop.f32.mrf.mxu0
    %v1221 = vadd.f32 %v1073, %v1220
    %v1222 = vpop.f32.mrf.mxu0
    %1223 = vdwg.mxu0
    %v1224 = vld [vmem:[%s15] sm:$0xff]
    %v1225 = vadd.f32 %v1146, %v1224
    %v1226 = vadd.f32 %v1221, %v1224
    %v1227 = vld [vmem:[%s16] sm:$0xf]
    %v1228 = vld [vmem:[%s17] sm:$0xff]
    %v1229 = vld [vmem:[%s17 + $0x8] sm:$0xff]
    %v1230 = vld [vmem:[%s18] sm:$0x7]
    %v1231 = vld [vmem:[%s19] sm:$0xff]
    %v1232 = vld [vmem:[%s19 + $0x8] sm:$0xff]
    %v1233 = vld [vmem:[%s20] sm:$0x1]
    %v1234 = vld [vmem:[%s21] sm:$0xff]
    %v1235 = vld [vmem:[%s21 + $0x8] sm:$0xff]
    %v1236 = vld [vmem:[%s22] sm:$0x1]
    %v1237 = vld [vmem:[%s23] sm:$0xff]
    %v1238 = vld [vmem:[%s23 + $0x8] sm:$0xff]
    %v1239 = vld [vmem:[%s23 + $0x10] sm:$0xff]
    %v1240 = vld [vmem:[%s23 + $0x18] sm:$0xff]
    %v1241 = vld [vmem:[%s23 + $0x20] sm:$0xff]
    %v1242 = vld [vmem:[%s23 + $0x28] sm:$0xff]
    %v1243 = vld [vmem:[%s23 + $0x30] sm:$0xff]
    %v1244 = vld [vmem:[%s23 + $0x38] sm:$0xff]
    %v1245 = vld [vmem:[%s24] sm:$0x1]
    %vm1246 = vcmask 130048
    %v1247 = vsel %vm1246, %v1225, 0.0
    %1248 = vadd.xlane.f32.xlu0 %v1247
    %v1249 = vpop.xlane.xlu0 %1248
    %v1250 = vsel %vm1246, %v1226, 0.0
    %1251 = vadd.xlane.f32.xlu0 %v1250
    %v1252 = vpop.xlane.xlu0 %1251
    %v1253 = vrcp.pop 16.0
    %v1254 = vmul.f32 %v1249, %v1253
    %v1255 = vmul.f32 %v1252, %v1253
    %v1256 = vsub.f32 %v1225, %v1254
    %v1257 = vsub.f32 %v1226, %v1255
    %v1258 = vmul.f32 %v1256, %v1256
    %v1259 = vmul.f32 %v1257, %v1257
    %v1260 = vsel %vm1246, %v1258, 0.0
    %1261 = vadd.xlane.f32.xlu0 %v1260
    %v1262 = vpop.xlane.xlu0 %1261
    %v1263 = vsel %vm1246, %v1259, 0.0
    %1264 = vadd.xlane.f32.xlu0 %v1263
    %v1265 = vpop.xlane.xlu0 %1264
    %v1266 = vmul.f32 %v1262, %v1253
    %v1267 = vmul.f32 %v1265, %v1253
    %v1268 = vadd.f32 %v1266, 1e-06
    %v1269 = vadd.f32 %v1267, 1e-06
    %v1270 = vrsqrt.pop %v1268
    %v1271 = vrsqrt.pop %v1269
    %v1272 = vmul.f32 %v1256, %v1270
    %v1273 = vmul.f32 %v1257, %v1271
    %v1274 = vlaneseq
    %v1275 = vshrl.u32 %v1274, 7
    %v1276 = vsub.s32 0, %v1275
    %v1277 = vrot.slane %v1227, %v1276
    %v1278 = vmul.f32 %v1272, %v1277
    %v1279 = vmul.f32 %v1273, %v1277
    %v1280 = vlaneseq
    %v1281 = vshrl.u32 %v1280, 7
    %v1282 = vsub.s32 1, %v1281
    %v1283 = vrot.slane %v1227, %v1282
    %v1284 = vadd.f32 %v1278, %v1283
    %v1285 = vadd.f32 %v1279, %v1283
    %v1287 = vsel %vm1246, %v1284, 0
    %v1290 = vsel %vm1246, %v1285, 0
    %1292 = vmatprep.subr.mxu0 0.0
    %1293 = vmatpush1.msra.mxu0 0.0
    %1294 = vmatprep.subr.mxu0 0.0
    %1295 = vmatpush1.msra.mxu0 0.0
    %1296 = vmatprep.subr.mxu0 0.0
    %1297 = vmatpush1.msra.mxu0 0.0
    %1298 = vmatprep.subr.mxu0 0.0
    %1299 = vmatpush1.msra.mxu0 0.0
    %1300 = vmatprep.subr.mxu0 0.0
    %1301 = vmatpush1.msra.mxu0 0.0
    %1302 = vmatprep.subr.mxu0 0.0
    %1303 = vmatpush1.msra.mxu0 0.0
    %1304 = vmatprep.subr.mxu0 0.0
    %1305 = vmatpush1.msra.mxu0 0.0
    %1306 = vmatprep.subr.mxu0 0.0
    %1307 = vmatpush1.msra.mxu0 0.0
    %1308 = vmatprep.subr.mxu0 0.0
    %1309 = vmatpush1.msra.mxu0 0.0
    %1310 = vmatprep.subr.mxu0 0.0
    %1311 = vmatpush1.msra.mxu0 0.0
    %1312 = vmatprep.subr.mxu0 0.0
    %1313 = vmatpush1.msra.mxu0 0.0
    %1314 = vmatprep.subr.mxu0 0.0
    %1315 = vmatpush1.msra.mxu0 0.0
    %1316 = vmatprep.subr.mxu0 0.0
    %1317 = vmatpush1.msra.mxu0 0.0
    %1318 = vmatprep.subr.mxu0 0.0
    %1319 = vmatpush1.msra.mxu0 0.0
    %1320 = vmatprep.subr.mxu0 0.0
    %1321 = vmatpush1.msra.mxu0 %v1229
    %1322 = vmatprep.subr.mxu0 0.0
    %1323 = vmatpush1.msra.mxu0 %v1228
    %1324 = vmatprep.subr.mxu0 0.0
    %1325 = vmatpush2.msra.mxu0 0.0
    %1326 = vmatprep.subr.mxu0 0.0
    %1327 = vmatpush2.msra.mxu0 0.0
    %1328 = vmatprep.subr.mxu0 0.0
    %1329 = vmatpush2.msra.mxu0 0.0
    %1330 = vmatprep.subr.mxu0 0.0
    %1331 = vmatpush2.msra.mxu0 0.0
    %1332 = vmatprep.subr.mxu0 0.0
    %1333 = vmatpush2.msra.mxu0 0.0
    %1334 = vmatprep.subr.mxu0 0.0
    %1335 = vmatpush2.msra.mxu0 0.0
    %1336 = vmatprep.subr.mxu0 0.0
    %1337 = vmatpush2.msra.mxu0 0.0
    %1338 = vmatprep.subr.mxu0 0.0
    %1339 = vmatpush2.msra.mxu0 0.0
    %1340 = vmatprep.subr.mxu0 0.0
    %1341 = vmatpush2.msra.mxu0 0.0
    %1342 = vmatprep.subr.mxu0 0.0
    %1343 = vmatpush2.msra.mxu0 0.0
    %1344 = vmatprep.subr.mxu0 0.0
    %1345 = vmatpush2.msra.mxu0 0.0
    %1346 = vmatprep.subr.mxu0 0.0
    %1347 = vmatpush2.msra.mxu0 0.0
    %1348 = vmatprep.subr.mxu0 0.0
    %1349 = vmatpush2.msra.mxu0 0.0
    %1350 = vmatprep.subr.mxu0 0.0
    %1351 = vmatpush2.msra.mxu0 0.0
    %1352 = vmatprep.subr.mxu0 0.0
    %1353 = vmatpush2.msra.mxu0 0.0
    %1354 = vmatprep.subr.mxu0 0.0
    %1355 = vmatpush2.msra.mxu0 0.0
    %1356 = vmatprep.mubr.f32.mxu0 0.0
    %1357 = vmatmul.mubr.f32.gmra.mxu0 %v1287
    %v1358 = vpop.f32.mrf.mxu0
    %v1359 = vadd.f32 0.0, %v1358
    %v1360 = vpop.f32.mrf.mxu0
    %1361 = vmatprep.mubr.f32.mxu0 0.0
    %1362 = vmatmul.mubr.f32.gmra.mxu0 %v1290
    %v1363 = vpop.f32.mrf.mxu0
    %v1364 = vadd.f32 0.0, %v1363
    %v1365 = vpop.f32.mrf.mxu0
    %1366 = vdwg.mxu0
    %v1367 = vlaneseq
    %v1368 = vshrl.u32 %v1367, 7
    %v1369 = vsub.s32 0, %v1368
    %v1370 = vrot.slane %v1230, %v1369
    %v1371 = vadd.f32 %v1359, %v1370
    %v1372 = vadd.f32 %v1364, %v1370
    %v1373 = vlaneseq
    %v1374 = vshrl.u32 %v1373, 7
    %v1375 = vsub.s32 1, %v1374
    %v1376 = vrot.slane %v1230, %v1375
    %1378 = vrot.lane.b32.xlu0 %v1376, 16
    %v1379 = vpop.permute.xlu0 %1378
    %v1381 = vadd.f32 %v1359, %v1379
    %v1382 = vadd.f32 %v1364, %v1379
    %v1383 = vlaneseq
    %v1384 = vshrl.u32 %v1383, 7
    %v1385 = vsub.s32 2, %v1384
    %v1386 = vrot.slane %v1230, %v1385
    %1388 = vrot.lane.b32.xlu0 %v1386, 32
    %v1389 = vpop.permute.xlu0 %1388
    %v1391 = vadd.f32 %v1359, %v1389
    %v1392 = vadd.f32 %v1364, %v1389
    %1394 = vrot.lane.b32.xlu0 %v1381, 112
    %v1395 = vpop.permute.xlu0 %1394
    %v1397 = vsel %vm1246, %v1371, 0
    %v1399 = vsel %vm1246, %v1395, 0
    %1401 = vmatprep.subr.mxu0 0.0
    %1402 = vmatpush1.xpose.msra.mxu0 0.0
    %1403 = vmatprep.subr.mxu0 0.0
    %1404 = vmatpush1.xpose.msra.mxu0 0.0
    %1405 = vmatprep.subr.mxu0 0.0
    %1406 = vmatpush1.xpose.msra.mxu0 0.0
    %1407 = vmatprep.subr.mxu0 0.0
    %1408 = vmatpush1.xpose.msra.mxu0 0.0
    %1409 = vmatprep.subr.mxu0 0.0
    %1410 = vmatpush1.xpose.msra.mxu0 0.0
    %1411 = vmatprep.subr.mxu0 0.0
    %1412 = vmatpush1.xpose.msra.mxu0 0.0
    %1413 = vmatprep.subr.mxu0 0.0
    %1414 = vmatpush1.xpose.msra.mxu0 0.0
    %1415 = vmatprep.subr.mxu0 0.0
    %1416 = vmatpush1.xpose.msra.mxu0 0.0
    %1417 = vmatprep.subr.mxu0 0.0
    %1418 = vmatpush1.xpose.msra.mxu0 0.0
    %1419 = vmatprep.subr.mxu0 0.0
    %1420 = vmatpush1.xpose.msra.mxu0 0.0
    %1421 = vmatprep.subr.mxu0 0.0
    %1422 = vmatpush1.xpose.msra.mxu0 0.0
    %1423 = vmatprep.subr.mxu0 0.0
    %1424 = vmatpush1.xpose.msra.mxu0 0.0
    %1425 = vmatprep.subr.mxu0 0.0
    %1426 = vmatpush1.xpose.msra.mxu0 0.0
    %1427 = vmatprep.subr.mxu0 0.0
    %1428 = vmatpush1.xpose.msra.mxu0 0.0
    %1429 = vmatprep.subr.mxu0 0.0
    %1430 = vmatpush1.xpose.msra.mxu0 0.0
    %1431 = vmatprep.subr.mxu0 0.0
    %1432 = vmatpush1.xpose.msra.mxu0 %v1399
    %1433 = vmatprep.subr.mxu0 0.0
    %1434 = vmatpush2.xpose.msra.mxu0 0.0
    %1435 = vmatprep.subr.mxu0 0.0
    %1436 = vmatpush2.xpose.msra.mxu0 0.0
    %1437 = vmatprep.subr.mxu0 0.0
    %1438 = vmatpush2.xpose.msra.mxu0 0.0
    %1439 = vmatprep.subr.mxu0 0.0
    %1440 = vmatpush2.xpose.msra.mxu0 0.0
    %1441 = vmatprep.subr.mxu0 0.0
    %1442 = vmatpush2.xpose.msra.mxu0 0.0
    %1443 = vmatprep.subr.mxu0 0.0
    %1444 = vmatpush2.xpose.msra.mxu0 0.0
    %1445 = vmatprep.subr.mxu0 0.0
    %1446 = vmatpush2.xpose.msra.mxu0 0.0
    %1447 = vmatprep.subr.mxu0 0.0
    %1448 = vmatpush2.xpose.msra.mxu0 0.0
    %1449 = vmatprep.subr.mxu0 0.0
    %1450 = vmatpush2.xpose.msra.mxu0 0.0
    %1451 = vmatprep.subr.mxu0 0.0
    %1452 = vmatpush2.xpose.msra.mxu0 0.0
    %1453 = vmatprep.subr.mxu0 0.0
    %1454 = vmatpush2.xpose.msra.mxu0 0.0
    %1455 = vmatprep.subr.mxu0 0.0
    %1456 = vmatpush2.xpose.msra.mxu0 0.0
    %1457 = vmatprep.subr.mxu0 0.0
    %1458 = vmatpush2.xpose.msra.mxu0 0.0
    %1459 = vmatprep.subr.mxu0 0.0
    %1460 = vmatpush2.xpose.msra.mxu0 0.0
    %1461 = vmatprep.subr.mxu0 0.0
    %1462 = vmatpush2.xpose.msra.mxu0 0.0
    %1463 = vmatprep.subr.mxu0 0.0
    %1464 = vmatpush2.xpose.msra.mxu0 0.0
    %1465 = vmatprep.mubr.f32.mxu0 0.0
    %1466 = vmatmul.mubr.f32.gmra.mxu0 %v1397
    %v1467 = vpop.f32.mrf.mxu0
    %v1468 = vadd.f32 0.0, %v1467
    %v1469 = vpop.f32.mrf.mxu0
    %1470 = vdwg.mxu0
    %1472 = vrot.lane.b32.xlu0 %v1382, 112
    %v1473 = vpop.permute.xlu0 %1472
    %v1475 = vsel %vm1246, %v1372, 0
    %v1477 = vsel %vm1246, %v1473, 0
    %1479 = vmatprep.subr.mxu0 0.0
    %1480 = vmatpush1.xpose.msra.mxu0 0.0
    %1481 = vmatprep.subr.mxu0 0.0
    %1482 = vmatpush1.xpose.msra.mxu0 0.0
    %1483 = vmatprep.subr.mxu0 0.0
    %1484 = vmatpush1.xpose.msra.mxu0 0.0
    %1485 = vmatprep.subr.mxu0 0.0
    %1486 = vmatpush1.xpose.msra.mxu0 0.0
    %1487 = vmatprep.subr.mxu0 0.0
    %1488 = vmatpush1.xpose.msra.mxu0 0.0
    %1489 = vmatprep.subr.mxu0 0.0
    %1490 = vmatpush1.xpose.msra.mxu0 0.0
    %1491 = vmatprep.subr.mxu0 0.0
    %1492 = vmatpush1.xpose.msra.mxu0 0.0
    %1493 = vmatprep.subr.mxu0 0.0
    %1494 = vmatpush1.xpose.msra.mxu0 0.0
    %1495 = vmatprep.subr.mxu0 0.0
    %1496 = vmatpush1.xpose.msra.mxu0 0.0
    %1497 = vmatprep.subr.mxu0 0.0
    %1498 = vmatpush1.xpose.msra.mxu0 0.0
    %1499 = vmatprep.subr.mxu0 0.0
    %1500 = vmatpush1.xpose.msra.mxu0 0.0
    %1501 = vmatprep.subr.mxu0 0.0
    %1502 = vmatpush1.xpose.msra.mxu0 0.0
    %1503 = vmatprep.subr.mxu0 0.0
    %1504 = vmatpush1.xpose.msra.mxu0 0.0
    %1505 = vmatprep.subr.mxu0 0.0
    %1506 = vmatpush1.xpose.msra.mxu0 0.0
    %1507 = vmatprep.subr.mxu0 0.0
    %1508 = vmatpush1.xpose.msra.mxu0 0.0
    %1509 = vmatprep.subr.mxu0 0.0
    %1510 = vmatpush1.xpose.msra.mxu0 %v1477
    %1511 = vmatprep.subr.mxu0 0.0
    %1512 = vmatpush2.xpose.msra.mxu0 0.0
    %1513 = vmatprep.subr.mxu0 0.0
    %1514 = vmatpush2.xpose.msra.mxu0 0.0
    %1515 = vmatprep.subr.mxu0 0.0
    %1516 = vmatpush2.xpose.msra.mxu0 0.0
    %1517 = vmatprep.subr.mxu0 0.0
    %1518 = vmatpush2.xpose.msra.mxu0 0.0
    %1519 = vmatprep.subr.mxu0 0.0
    %1520 = vmatpush2.xpose.msra.mxu0 0.0
    %1521 = vmatprep.subr.mxu0 0.0
    %1522 = vmatpush2.xpose.msra.mxu0 0.0
    %1523 = vmatprep.subr.mxu0 0.0
    %1524 = vmatpush2.xpose.msra.mxu0 0.0
    %1525 = vmatprep.subr.mxu0 0.0
    %1526 = vmatpush2.xpose.msra.mxu0 0.0
    %1527 = vmatprep.subr.mxu0 0.0
    %1528 = vmatpush2.xpose.msra.mxu0 0.0
    %1529 = vmatprep.subr.mxu0 0.0
    %1530 = vmatpush2.xpose.msra.mxu0 0.0
    %1531 = vmatprep.subr.mxu0 0.0
    %1532 = vmatpush2.xpose.msra.mxu0 0.0
    %1533 = vmatprep.subr.mxu0 0.0
    %1534 = vmatpush2.xpose.msra.mxu0 0.0
    %1535 = vmatprep.subr.mxu0 0.0
    %1536 = vmatpush2.xpose.msra.mxu0 0.0
    %1537 = vmatprep.subr.mxu0 0.0
    %1538 = vmatpush2.xpose.msra.mxu0 0.0
    %1539 = vmatprep.subr.mxu0 0.0
    %1540 = vmatpush2.xpose.msra.mxu0 0.0
    %1541 = vmatprep.subr.mxu0 0.0
    %1542 = vmatpush2.xpose.msra.mxu0 0.0
    %1543 = vmatprep.mubr.f32.mxu0 0.0
    %1544 = vmatmul.mubr.f32.gmra.mxu0 %v1475
    %v1545 = vpop.f32.mrf.mxu0
    %v1546 = vadd.f32 0.0, %v1545
    %v1547 = vpop.f32.mrf.mxu0
    %1548 = vdwg.mxu0
    %v1549 = vmul.f32 %v1468, 0.25
    %v1550 = vmul.f32 %v1546, 0.25
    %vm1551 = vcmask 64512
    %v1552 = vsel %vm1551, %v1549, -inf
    %1553 = vmax.xlane.f32.xlu0 %v1552
    %v1554 = vpop.xlane.xlu0 %1553
    %v1555 = vsel %vm1551, %v1550, -inf
    %1556 = vmax.xlane.f32.xlu0 %v1555
    %v1557 = vpop.xlane.xlu0 %1556
    %v1558 = vsub.f32 %v1549, %v1554
    %v1559 = vsub.f32 %v1550, %v1557
    %v1560 = vmul.f32 %v1558, 1.442695
    %v1561 = vpow.pop %v1560
    %v1562 = vmul.f32 %v1559, 1.442695
    %v1563 = vpow.pop %v1562
    %v1564 = vsel %vm1551, %v1561, 0.0
    %1565 = vadd.xlane.f32.xlu0 %v1564
    %v1566 = vpop.xlane.xlu0 %1565
    %v1567 = vsel %vm1551, %v1563, 0.0
    %1568 = vadd.xlane.f32.xlu0 %v1567
    %v1569 = vpop.xlane.xlu0 %1568
    %v1570 = vrcp.pop %v1566
    %v1571 = vrcp.pop %v1569
    %v1572 = vmul.f32 %v1561, %v1570
    %v1573 = vmul.f32 %v1563, %v1571
    %1575 = vrot.lane.b32.xlu0 %v1391, 96
    %v1576 = vpop.permute.xlu0 %1575
    %v1579 = vsel %vm1551, %v1572, 0
    %1581 = vmatprep.subr.mxu0 0.0
    %1582 = vmatpush1.msra.mxu0 0.0
    %1583 = vmatprep.subr.mxu0 0.0
    %1584 = vmatpush1.msra.mxu0 0.0
    %1585 = vmatprep.subr.mxu0 0.0
    %1586 = vmatpush1.msra.mxu0 0.0
    %1587 = vmatprep.subr.mxu0 0.0
    %1588 = vmatpush1.msra.mxu0 0.0
    %1589 = vmatprep.subr.mxu0 0.0
    %1590 = vmatpush1.msra.mxu0 0.0
    %1591 = vmatprep.subr.mxu0 0.0
    %1592 = vmatpush1.msra.mxu0 0.0
    %1593 = vmatprep.subr.mxu0 0.0
    %1594 = vmatpush1.msra.mxu0 0.0
    %1595 = vmatprep.subr.mxu0 0.0
    %1596 = vmatpush1.msra.mxu0 0.0
    %1597 = vmatprep.subr.mxu0 0.0
    %1598 = vmatpush1.msra.mxu0 0.0
    %1599 = vmatprep.subr.mxu0 0.0
    %1600 = vmatpush1.msra.mxu0 0.0
    %1601 = vmatprep.subr.mxu0 0.0
    %1602 = vmatpush1.msra.mxu0 0.0
    %1603 = vmatprep.subr.mxu0 0.0
    %1604 = vmatpush1.msra.mxu0 0.0
    %1605 = vmatprep.subr.mxu0 0.0
    %1606 = vmatpush1.msra.mxu0 0.0
    %1607 = vmatprep.subr.mxu0 0.0
    %1608 = vmatpush1.msra.mxu0 0.0
    %1609 = vmatprep.subr.mxu0 0.0
    %1610 = vmatpush1.msra.mxu0 0.0
    %1611 = vmatprep.subr.mxu0 0.0
    %1612 = vmatpush1.msra.mxu0 %v1576
    %1613 = vmatprep.subr.mxu0 0.0
    %1614 = vmatpush2.msra.mxu0 0.0
    %1615 = vmatprep.subr.mxu0 0.0
    %1616 = vmatpush2.msra.mxu0 0.0
    %1617 = vmatprep.subr.mxu0 0.0
    %1618 = vmatpush2.msra.mxu0 0.0
    %1619 = vmatprep.subr.mxu0 0.0
    %1620 = vmatpush2.msra.mxu0 0.0
    %1621 = vmatprep.subr.mxu0 0.0
    %1622 = vmatpush2.msra.mxu0 0.0
    %1623 = vmatprep.subr.mxu0 0.0
    %1624 = vmatpush2.msra.mxu0 0.0
    %1625 = vmatprep.subr.mxu0 0.0
    %1626 = vmatpush2.msra.mxu0 0.0
    %1627 = vmatprep.subr.mxu0 0.0
    %1628 = vmatpush2.msra.mxu0 0.0
    %1629 = vmatprep.subr.mxu0 0.0
    %1630 = vmatpush2.msra.mxu0 0.0
    %1631 = vmatprep.subr.mxu0 0.0
    %1632 = vmatpush2.msra.mxu0 0.0
    %1633 = vmatprep.subr.mxu0 0.0
    %1634 = vmatpush2.msra.mxu0 0.0
    %1635 = vmatprep.subr.mxu0 0.0
    %1636 = vmatpush2.msra.mxu0 0.0
    %1637 = vmatprep.subr.mxu0 0.0
    %1638 = vmatpush2.msra.mxu0 0.0
    %1639 = vmatprep.subr.mxu0 0.0
    %1640 = vmatpush2.msra.mxu0 0.0
    %1641 = vmatprep.subr.mxu0 0.0
    %1642 = vmatpush2.msra.mxu0 0.0
    %1643 = vmatprep.subr.mxu0 0.0
    %1644 = vmatpush2.msra.mxu0 0.0
    %1645 = vmatprep.mubr.f32.mxu0 0.0
    %1646 = vmatmul.mubr.f32.gmra.mxu0 %v1579
    %v1647 = vpop.f32.mrf.mxu0
    %v1648 = vadd.f32 0.0, %v1647
    %v1649 = vpop.f32.mrf.mxu0
    %1650 = vdwg.mxu0
    %1652 = vrot.lane.b32.xlu0 %v1392, 96
    %v1653 = vpop.permute.xlu0 %1652
    %v1656 = vsel %vm1551, %v1573, 0
    %1658 = vmatprep.subr.mxu0 0.0
    %1659 = vmatpush1.msra.mxu0 0.0
    %1660 = vmatprep.subr.mxu0 0.0
    %1661 = vmatpush1.msra.mxu0 0.0
    %1662 = vmatprep.subr.mxu0 0.0
    %1663 = vmatpush1.msra.mxu0 0.0
    %1664 = vmatprep.subr.mxu0 0.0
    %1665 = vmatpush1.msra.mxu0 0.0
    %1666 = vmatprep.subr.mxu0 0.0
    %1667 = vmatpush1.msra.mxu0 0.0
    %1668 = vmatprep.subr.mxu0 0.0
    %1669 = vmatpush1.msra.mxu0 0.0
    %1670 = vmatprep.subr.mxu0 0.0
    %1671 = vmatpush1.msra.mxu0 0.0
    %1672 = vmatprep.subr.mxu0 0.0
    %1673 = vmatpush1.msra.mxu0 0.0
    %1674 = vmatprep.subr.mxu0 0.0
    %1675 = vmatpush1.msra.mxu0 0.0
    %1676 = vmatprep.subr.mxu0 0.0
    %1677 = vmatpush1.msra.mxu0 0.0
    %1678 = vmatprep.subr.mxu0 0.0
    %1679 = vmatpush1.msra.mxu0 0.0
    %1680 = vmatprep.subr.mxu0 0.0
    %1681 = vmatpush1.msra.mxu0 0.0
    %1682 = vmatprep.subr.mxu0 0.0
    %1683 = vmatpush1.msra.mxu0 0.0
    %1684 = vmatprep.subr.mxu0 0.0
    %1685 = vmatpush1.msra.mxu0 0.0
    %1686 = vmatprep.subr.mxu0 0.0
    %1687 = vmatpush1.msra.mxu0 0.0
    %1688 = vmatprep.subr.mxu0 0.0
    %1689 = vmatpush1.msra.mxu0 %v1653
    %1690 = vmatprep.subr.mxu0 0.0
    %1691 = vmatpush2.msra.mxu0 0.0
    %1692 = vmatprep.subr.mxu0 0.0
    %1693 = vmatpush2.msra.mxu0 0.0
    %1694 = vmatprep.subr.mxu0 0.0
    %1695 = vmatpush2.msra.mxu0 0.0
    %1696 = vmatprep.subr.mxu0 0.0
    %1697 = vmatpush2.msra.mxu0 0.0
    %1698 = vmatprep.subr.mxu0 0.0
    %1699 = vmatpush2.msra.mxu0 0.0
    %1700 = vmatprep.subr.mxu0 0.0
    %1701 = vmatpush2.msra.mxu0 0.0
    %1702 = vmatprep.subr.mxu0 0.0
    %1703 = vmatpush2.msra.mxu0 0.0
    %1704 = vmatprep.subr.mxu0 0.0
    %1705 = vmatpush2.msra.mxu0 0.0
    %1706 = vmatprep.subr.mxu0 0.0
    %1707 = vmatpush2.msra.mxu0 0.0
    %1708 = vmatprep.subr.mxu0 0.0
    %1709 = vmatpush2.msra.mxu0 0.0
    %1710 = vmatprep.subr.mxu0 0.0
    %1711 = vmatpush2.msra.mxu0 0.0
    %1712 = vmatprep.subr.mxu0 0.0
    %1713 = vmatpush2.msra.mxu0 0.0
    %1714 = vmatprep.subr.mxu0 0.0
    %1715 = vmatpush2.msra.mxu0 0.0
    %1716 = vmatprep.subr.mxu0 0.0
    %1717 = vmatpush2.msra.mxu0 0.0
    %1718 = vmatprep.subr.mxu0 0.0
    %1719 = vmatpush2.msra.mxu0 0.0
    %1720 = vmatprep.subr.mxu0 0.0
    %1721 = vmatpush2.msra.mxu0 0.0
    %1722 = vmatprep.mubr.f32.mxu0 0.0
    %1723 = vmatmul.mubr.f32.gmra.mxu0 %v1656
    %v1724 = vpop.f32.mrf.mxu0
    %v1725 = vadd.f32 0.0, %v1724
    %v1726 = vpop.f32.mrf.mxu0
    %1727 = vdwg.mxu0
    %v1729 = vlaneseq
    %v1730 = vshrl.u32 %v1729, 7
    %v1731 = vsub.s32 0, %v1730
    %v1732 = vrot.slane %v1233, %v1731
    %v1735 = vsel %vm1246, %v1648, 0
    %v1738 = vsel %vm1246, %v1725, 0
    %1740 = vmatprep.subr.mxu0 0.0
    %1741 = vmatpush1.msra.mxu0 0.0
    %1742 = vmatprep.subr.mxu0 0.0
    %1743 = vmatpush1.msra.mxu0 0.0
    %1744 = vmatprep.subr.mxu0 0.0
    %1745 = vmatpush1.msra.mxu0 0.0
    %1746 = vmatprep.subr.mxu0 0.0
    %1747 = vmatpush1.msra.mxu0 0.0
    %1748 = vmatprep.subr.mxu0 0.0
    %1749 = vmatpush1.msra.mxu0 0.0
    %1750 = vmatprep.subr.mxu0 0.0
    %1751 = vmatpush1.msra.mxu0 0.0
    %1752 = vmatprep.subr.mxu0 0.0
    %1753 = vmatpush1.msra.mxu0 0.0
    %1754 = vmatprep.subr.mxu0 0.0
    %1755 = vmatpush1.msra.mxu0 0.0
    %1756 = vmatprep.subr.mxu0 0.0
    %1757 = vmatpush1.msra.mxu0 0.0
    %1758 = vmatprep.subr.mxu0 0.0
    %1759 = vmatpush1.msra.mxu0 0.0
    %1760 = vmatprep.subr.mxu0 0.0
    %1761 = vmatpush1.msra.mxu0 0.0
    %1762 = vmatprep.subr.mxu0 0.0
    %1763 = vmatpush1.msra.mxu0 0.0
    %1764 = vmatprep.subr.mxu0 0.0
    %1765 = vmatpush1.msra.mxu0 0.0
    %1766 = vmatprep.subr.mxu0 0.0
    %1767 = vmatpush1.msra.mxu0 0.0
    %1768 = vmatprep.subr.mxu0 0.0
    %1769 = vmatpush1.msra.mxu0 %v1232
    %1770 = vmatprep.subr.mxu0 0.0
    %1771 = vmatpush1.msra.mxu0 %v1231
    %1772 = vmatprep.subr.mxu0 0.0
    %1773 = vmatpush2.msra.mxu0 0.0
    %1774 = vmatprep.subr.mxu0 0.0
    %1775 = vmatpush2.msra.mxu0 0.0
    %1776 = vmatprep.subr.mxu0 0.0
    %1777 = vmatpush2.msra.mxu0 0.0
    %1778 = vmatprep.subr.mxu0 0.0
    %1779 = vmatpush2.msra.mxu0 0.0
    %1780 = vmatprep.subr.mxu0 0.0
    %1781 = vmatpush2.msra.mxu0 0.0
    %1782 = vmatprep.subr.mxu0 0.0
    %1783 = vmatpush2.msra.mxu0 0.0
    %1784 = vmatprep.subr.mxu0 0.0
    %1785 = vmatpush2.msra.mxu0 0.0
    %1786 = vmatprep.subr.mxu0 0.0
    %1787 = vmatpush2.msra.mxu0 0.0
    %1788 = vmatprep.subr.mxu0 0.0
    %1789 = vmatpush2.msra.mxu0 0.0
    %1790 = vmatprep.subr.mxu0 0.0
    %1791 = vmatpush2.msra.mxu0 0.0
    %1792 = vmatprep.subr.mxu0 0.0
    %1793 = vmatpush2.msra.mxu0 0.0
    %1794 = vmatprep.subr.mxu0 0.0
    %1795 = vmatpush2.msra.mxu0 0.0
    %1796 = vmatprep.subr.mxu0 0.0
    %1797 = vmatpush2.msra.mxu0 0.0
    %1798 = vmatprep.subr.mxu0 0.0
    %1799 = vmatpush2.msra.mxu0 0.0
    %1800 = vmatprep.subr.mxu0 0.0
    %1801 = vmatpush2.msra.mxu0 0.0
    %1802 = vmatprep.subr.mxu0 0.0
    %1803 = vmatpush2.msra.mxu0 0.0
    %1804 = vmatprep.mubr.f32.mxu0 0.0
    %1805 = vmatmul.mubr.f32.gmra.mxu0 %v1735
    %v1806 = vpop.f32.mrf.mxu0
    %v1807 = vadd.f32 %v1732, %v1806
    %v1808 = vpop.f32.mrf.mxu0
    %1809 = vmatprep.mubr.f32.mxu0 0.0
    %1810 = vmatmul.mubr.f32.gmra.mxu0 %v1738
    %v1811 = vpop.f32.mrf.mxu0
    %v1812 = vadd.f32 %v1732, %v1811
    %v1813 = vpop.f32.mrf.mxu0
    %1814 = vdwg.mxu0
    %v1815 = vadd.f32 %v1225, %v1807
    %v1816 = vadd.f32 %v1226, %v1812
    %v1817 = vsel %vm1246, %v1815, 0.0
    %1818 = vadd.xlane.f32.xlu0 %v1817
    %v1819 = vpop.xlane.xlu0 %1818
    %v1820 = vsel %vm1246, %v1816, 0.0
    %1821 = vadd.xlane.f32.xlu0 %v1820
    %v1822 = vpop.xlane.xlu0 %1821
    %v1823 = vmul.f32 %v1819, %v1253
    %v1824 = vmul.f32 %v1822, %v1253
    %v1825 = vsub.f32 %v1815, %v1823
    %v1826 = vsub.f32 %v1816, %v1824
    %v1827 = vmul.f32 %v1825, %v1825
    %v1828 = vmul.f32 %v1826, %v1826
    %v1829 = vsel %vm1246, %v1827, 0.0
    %1830 = vadd.xlane.f32.xlu0 %v1829
    %v1831 = vpop.xlane.xlu0 %1830
    %v1832 = vsel %vm1246, %v1828, 0.0
    %1833 = vadd.xlane.f32.xlu0 %v1832
    %v1834 = vpop.xlane.xlu0 %1833
    %v1835 = vmul.f32 %v1831, %v1253
    %v1836 = vmul.f32 %v1834, %v1253
    %v1837 = vadd.f32 %v1835, 1e-06
    %v1838 = vadd.f32 %v1836, 1e-06
    %v1839 = vrsqrt.pop %v1837
    %v1840 = vrsqrt.pop %v1838
    %v1841 = vmul.f32 %v1825, %v1839
    %v1842 = vmul.f32 %v1826, %v1840
    %v1843 = vlaneseq
    %v1844 = vshrl.u32 %v1843, 7
    %v1845 = vsub.s32 2, %v1844
    %v1846 = vrot.slane %v1227, %v1845
    %v1847 = vmul.f32 %v1841, %v1846
    %v1848 = vmul.f32 %v1842, %v1846
    %v1849 = vlaneseq
    %v1850 = vshrl.u32 %v1849, 7
    %v1851 = vsub.s32 3, %v1850
    %v1852 = vrot.slane %v1227, %v1851
    %v1853 = vadd.f32 %v1847, %v1852
    %v1854 = vadd.f32 %v1848, %v1852
    %v1856 = vlaneseq
    %v1857 = vshrl.u32 %v1856, 7
    %v1858 = vsub.s32 0, %v1857
    %v1859 = vrot.slane %v1236, %v1858
    %v1862 = vsel %vm1246, %v1853, 0
    %v1865 = vsel %vm1246, %v1854, 0
    %1867 = vmatprep.subr.mxu0 0.0
    %1868 = vmatpush1.msra.mxu0 0.0
    %1869 = vmatprep.subr.mxu0 0.0
    %1870 = vmatpush1.msra.mxu0 0.0
    %1871 = vmatprep.subr.mxu0 0.0
    %1872 = vmatpush1.msra.mxu0 0.0
    %1873 = vmatprep.subr.mxu0 0.0
    %1874 = vmatpush1.msra.mxu0 0.0
    %1875 = vmatprep.subr.mxu0 0.0
    %1876 = vmatpush1.msra.mxu0 0.0
    %1877 = vmatprep.subr.mxu0 0.0
    %1878 = vmatpush1.msra.mxu0 0.0
    %1879 = vmatprep.subr.mxu0 0.0
    %1880 = vmatpush1.msra.mxu0 0.0
    %1881 = vmatprep.subr.mxu0 0.0
    %1882 = vmatpush1.msra.mxu0 0.0
    %1883 = vmatprep.subr.mxu0 0.0
    %1884 = vmatpush1.msra.mxu0 0.0
    %1885 = vmatprep.subr.mxu0 0.0
    %1886 = vmatpush1.msra.mxu0 0.0
    %1887 = vmatprep.subr.mxu0 0.0
    %1888 = vmatpush1.msra.mxu0 0.0
    %1889 = vmatprep.subr.mxu0 0.0
    %1890 = vmatpush1.msra.mxu0 0.0
    %1891 = vmatprep.subr.mxu0 0.0
    %1892 = vmatpush1.msra.mxu0 0.0
    %1893 = vmatprep.subr.mxu0 0.0
    %1894 = vmatpush1.msra.mxu0 0.0
    %1895 = vmatprep.subr.mxu0 0.0
    %1896 = vmatpush1.msra.mxu0 %v1235
    %1897 = vmatprep.subr.mxu0 0.0
    %1898 = vmatpush1.msra.mxu0 %v1234
    %1899 = vmatprep.subr.mxu0 0.0
    %1900 = vmatpush2.msra.mxu0 0.0
    %1901 = vmatprep.subr.mxu0 0.0
    %1902 = vmatpush2.msra.mxu0 0.0
    %1903 = vmatprep.subr.mxu0 0.0
    %1904 = vmatpush2.msra.mxu0 0.0
    %1905 = vmatprep.subr.mxu0 0.0
    %1906 = vmatpush2.msra.mxu0 0.0
    %1907 = vmatprep.subr.mxu0 0.0
    %1908 = vmatpush2.msra.mxu0 0.0
    %1909 = vmatprep.subr.mxu0 0.0
    %1910 = vmatpush2.msra.mxu0 0.0
    %1911 = vmatprep.subr.mxu0 0.0
    %1912 = vmatpush2.msra.mxu0 0.0
    %1913 = vmatprep.subr.mxu0 0.0
    %1914 = vmatpush2.msra.mxu0 0.0
    %1915 = vmatprep.subr.mxu0 0.0
    %1916 = vmatpush2.msra.mxu0 0.0
    %1917 = vmatprep.subr.mxu0 0.0
    %1918 = vmatpush2.msra.mxu0 0.0
    %1919 = vmatprep.subr.mxu0 0.0
    %1920 = vmatpush2.msra.mxu0 0.0
    %1921 = vmatprep.subr.mxu0 0.0
    %1922 = vmatpush2.msra.mxu0 0.0
    %1923 = vmatprep.subr.mxu0 0.0
    %1924 = vmatpush2.msra.mxu0 0.0
    %1925 = vmatprep.subr.mxu0 0.0
    %1926 = vmatpush2.msra.mxu0 0.0
    %1927 = vmatprep.subr.mxu0 0.0
    %1928 = vmatpush2.msra.mxu0 0.0
    %1929 = vmatprep.subr.mxu0 0.0
    %1930 = vmatpush2.msra.mxu0 0.0
    %1931 = vmatprep.mubr.f32.mxu0 0.0
    %1932 = vmatmul.mubr.f32.gmra.mxu0 %v1862
    %v1933 = vpop.f32.mrf.mxu0
    %v1934 = vadd.f32 %v1859, %v1933
    %v1935 = vpop.f32.mrf.mxu0
    %1936 = vmatprep.mubr.f32.mxu0 0.0
    %1937 = vmatmul.mubr.f32.gmra.mxu0 %v1865
    %v1938 = vpop.f32.mrf.mxu0
    %v1939 = vadd.f32 %v1859, %v1938
    %v1940 = vpop.f32.mrf.mxu0
    %1941 = vdwg.mxu0
    %v1942 = vmul.f32 %v1934, %v1934
    %v1943 = vmul.f32 %v1939, %v1939
    %v1944 = vmul.f32 %v1934, %v1942
    %v1945 = vmul.f32 %v1939, %v1943
    %v1946 = vmul.f32 %v1944, 0.044715
    %v1947 = vmul.f32 %v1945, 0.044715
    %v1948 = vadd.f32 %v1934, %v1946
    %v1949 = vadd.f32 %v1939, %v1947
    %v1950 = vmul.f32 %v1948, 0.7978846
    %v1951 = vmul.f32 %v1949, 0.7978846
    %v1952 = vtanh.pop %v1950
    %v1953 = vtanh.pop %v1951
    %v1954 = vadd.f32 %v1952, 1.0
    %v1955 = vadd.f32 %v1953, 1.0
    %v1956 = vmul.f32 %v1954, 0.5
    %v1957 = vmul.f32 %v1955, 0.5
    %v1958 = vmul.f32 %v1934, %v1956
    %v1959 = vmul.f32 %v1939, %v1957
    %v1961 = vlaneseq
    %v1962 = vshrl.u32 %v1961, 7
    %v1963 = vsub.s32 0, %v1962
    %v1964 = vrot.slane %v1245, %v1963
    %vm1966 = vcmask 523264
    %v1968 = vsel %vm1966, %v1958, 0
    %v1971 = vsel %vm1966, %v1959, 0
    %1973 = vmatprep.subr.mxu0 0.0
    %1974 = vmatpush1.msra.mxu0 0.0
    %1975 = vmatprep.subr.mxu0 0.0
    %1976 = vmatpush1.msra.mxu0 0.0
    %1977 = vmatprep.subr.mxu0 0.0
    %1978 = vmatpush1.msra.mxu0 0.0
    %1979 = vmatprep.subr.mxu0 0.0
    %1980 = vmatpush1.msra.mxu0 0.0
    %1981 = vmatprep.subr.mxu0 0.0
    %1982 = vmatpush1.msra.mxu0 0.0
    %1983 = vmatprep.subr.mxu0 0.0
    %1984 = vmatpush1.msra.mxu0 0.0
    %1985 = vmatprep.subr.mxu0 0.0
    %1986 = vmatpush1.msra.mxu0 0.0
    %1987 = vmatprep.subr.mxu0 0.0
    %1988 = vmatpush1.msra.mxu0 0.0
    %1989 = vmatprep.subr.mxu0 0.0
    %1990 = vmatpush1.msra.mxu0 %v1244
    %1991 = vmatprep.subr.mxu0 0.0
    %1992 = vmatpush1.msra.mxu0 %v1243
    %1993 = vmatprep.subr.mxu0 0.0
    %1994 = vmatpush1.msra.mxu0 %v1242
    %1995 = vmatprep.subr.mxu0 0.0
    %1996 = vmatpush1.msra.mxu0 %v1241
    %1997 = vmatprep.subr.mxu0 0.0
    %1998 = vmatpush1.msra.mxu0 %v1240
    %1999 = vmatprep.subr.mxu0 0.0
    %2000 = vmatpush1.msra.mxu0 %v1239
    %2001 = vmatprep.subr.mxu0 0.0
    %2002 = vmatpush1.msra.mxu0 %v1238
    %2003 = vmatprep.subr.mxu0 0.0
    %2004 = vmatpush1.msra.mxu0 %v1237
    %2005 = vmatprep.subr.mxu0 0.0
    %2006 = vmatpush2.msra.mxu0 0.0
    %2007 = vmatprep.subr.mxu0 0.0
    %2008 = vmatpush2.msra.mxu0 0.0
    %2009 = vmatprep.subr.mxu0 0.0
    %2010 = vmatpush2.msra.mxu0 0.0
    %2011 = vmatprep.subr.mxu0 0.0
    %2012 = vmatpush2.msra.mxu0 0.0
    %2013 = vmatprep.subr.mxu0 0.0
    %2014 = vmatpush2.msra.mxu0 0.0
    %2015 = vmatprep.subr.mxu0 0.0
    %2016 = vmatpush2.msra.mxu0 0.0
    %2017 = vmatprep.subr.mxu0 0.0
    %2018 = vmatpush2.msra.mxu0 0.0
    %2019 = vmatprep.subr.mxu0 0.0
    %2020 = vmatpush2.msra.mxu0 0.0
    %2021 = vmatprep.subr.mxu0 0.0
    %2022 = vmatpush2.msra.mxu0 0.0
    %2023 = vmatprep.subr.mxu0 0.0
    %2024 = vmatpush2.msra.mxu0 0.0
    %2025 = vmatprep.subr.mxu0 0.0
    %2026 = vmatpush2.msra.mxu0 0.0
    %2027 = vmatprep.subr.mxu0 0.0
    %2028 = vmatpush2.msra.mxu0 0.0
    %2029 = vmatprep.subr.mxu0 0.0
    %2030 = vmatpush2.msra.mxu0 0.0
    %2031 = vmatprep.subr.mxu0 0.0
    %2032 = vmatpush2.msra.mxu0 0.0
    %2033 = vmatprep.subr.mxu0 0.0
    %2034 = vmatpush2.msra.mxu0 0.0
    %2035 = vmatprep.subr.mxu0 0.0
    %2036 = vmatpush2.msra.mxu0 0.0
    %2037 = vmatprep.mubr.f32.mxu0 0.0
    %2038 = vmatmul.mubr.f32.gmra.mxu0 %v1968
    %v2039 = vpop.f32.mrf.mxu0
    %v2040 = vadd.f32 %v1964, %v2039
    %v2041 = vpop.f32.mrf.mxu0
    %2042 = vmatprep.mubr.f32.mxu0 0.0
    %2043 = vmatmul.mubr.f32.gmra.mxu0 %v1971
    %v2044 = vpop.f32.mrf.mxu0
    %v2045 = vadd.f32 %v1964, %v2044
    %v2046 = vpop.f32.mrf.mxu0
    %2047 = vdwg.mxu0
    %v2048 = vadd.f32 %v1815, %v2040
    %v2049 = vadd.f32 %v1816, %v2045
    %v2050 = vld [vmem:[%s25] sm:$0x3]
    %v2051 = vsel %vm1246, %v2048, 0.0
    %2052 = vadd.xlane.f32.xlu0 %v2051
    %v2053 = vpop.xlane.xlu0 %2052
    %v2054 = vsel %vm1246, %v2049, 0.0
    %2055 = vadd.xlane.f32.xlu0 %v2054
    %v2056 = vpop.xlane.xlu0 %2055
    %v2057 = vmul.f32 %v2053, %v1253
    %v2058 = vmul.f32 %v2056, %v1253
    %v2059 = vsub.f32 %v2048, %v2057
    %v2060 = vsub.f32 %v2049, %v2058
    %v2061 = vmul.f32 %v2059, %v2059
    %v2062 = vmul.f32 %v2060, %v2060
    %v2063 = vsel %vm1246, %v2061, 0.0
    %2064 = vadd.xlane.f32.xlu0 %v2063
    %v2065 = vpop.xlane.xlu0 %2064
    %v2066 = vsel %vm1246, %v2062, 0.0
    %2067 = vadd.xlane.f32.xlu0 %v2066
    %v2068 = vpop.xlane.xlu0 %2067
    %v2069 = vmul.f32 %v2065, %v1253
    %v2070 = vmul.f32 %v2068, %v1253
    %v2071 = vadd.f32 %v2069, 1e-06
    %v2072 = vadd.f32 %v2070, 1e-06
    %v2073 = vrsqrt.pop %v2071
    %v2074 = vrsqrt.pop %v2072
    %v2075 = vmul.f32 %v2059, %v2073
    %v2076 = vmul.f32 %v2060, %v2074
    %v2077 = vlaneseq
    %v2078 = vshrl.u32 %v2077, 7
    %v2079 = vsub.s32 0, %v2078
    %v2080 = vrot.slane %v2050, %v2079
    %v2081 = vmul.f32 %v2075, %v2080
    %v2082 = vmul.f32 %v2076, %v2080
    %v2083 = vlaneseq
    %v2084 = vshrl.u32 %v2083, 7
    %v2085 = vsub.s32 1, %v2084
    %v2086 = vrot.slane %v2050, %v2085
    %v2087 = vadd.f32 %v2081, %v2086
    %v2088 = vadd.f32 %v2082, %v2086
    %v2089 = vld [vmem:[%s26] sm:$0xff]
    %v2090 = vld [vmem:[%s26 + $0x8] sm:$0xff]
    %v2091 = vld [vmem:[%s27] sm:$0x1]
    %v2093 = vlaneseq
    %v2094 = vshrl.u32 %v2093, 7
    %v2095 = vsub.s32 0, %v2094
    %v2096 = vrot.slane %v2091, %v2095
    %v2099 = vsel %vm1246, %v2087, 0
    %v2102 = vsel %vm1246, %v2088, 0
    %2104 = vmatprep.subr.mxu0 0.0
    %2105 = vmatpush1.msra.mxu0 0.0
    %2106 = vmatprep.subr.mxu0 0.0
    %2107 = vmatpush1.msra.mxu0 0.0
    %2108 = vmatprep.subr.mxu0 0.0
    %2109 = vmatpush1.msra.mxu0 0.0
    %2110 = vmatprep.subr.mxu0 0.0
    %2111 = vmatpush1.msra.mxu0 0.0
    %2112 = vmatprep.subr.mxu0 0.0
    %2113 = vmatpush1.msra.mxu0 0.0
    %2114 = vmatprep.subr.mxu0 0.0
    %2115 = vmatpush1.msra.mxu0 0.0
    %2116 = vmatprep.subr.mxu0 0.0
    %2117 = vmatpush1.msra.mxu0 0.0
    %2118 = vmatprep.subr.mxu0 0.0
    %2119 = vmatpush1.msra.mxu0 0.0
    %2120 = vmatprep.subr.mxu0 0.0
    %2121 = vmatpush1.msra.mxu0 0.0
    %2122 = vmatprep.subr.mxu0 0.0
    %2123 = vmatpush1.msra.mxu0 0.0
    %2124 = vmatprep.subr.mxu0 0.0
    %2125 = vmatpush1.msra.mxu0 0.0
    %2126 = vmatprep.subr.mxu0 0.0
    %2127 = vmatpush1.msra.mxu0 0.0
    %2128 = vmatprep.subr.mxu0 0.0
    %2129 = vmatpush1.msra.mxu0 0.0
    %2130 = vmatprep.subr.mxu0 0.0
    %2131 = vmatpush1.msra.mxu0 0.0
    %2132 = vmatprep.subr.mxu0 0.0
    %2133 = vmatpush1.msra.mxu0 %v2090
    %2134 = vmatprep.subr.mxu0 0.0
    %2135 = vmatpush1.msra.mxu0 %v2089
    %2136 = vmatprep.subr.mxu0 0.0
    %2137 = vmatpush2.msra.mxu0 0.0
    %2138 = vmatprep.subr.mxu0 0.0
    %2139 = vmatpush2.msra.mxu0 0.0
    %2140 = vmatprep.subr.mxu0 0.0
    %2141 = vmatpush2.msra.mxu0 0.0
    %2142 = vmatprep.subr.mxu0 0.0
    %2143 = vmatpush2.msra.mxu0 0.0
    %2144 = vmatprep.subr.mxu0 0.0
    %2145 = vmatpush2.msra.mxu0 0.0
    %2146 = vmatprep.subr.mxu0 0.0
    %2147 = vmatpush2.msra.mxu0 0.0
    %2148 = vmatprep.subr.mxu0 0.0
    %2149 = vmatpush2.msra.mxu0 0.0
    %2150 = vmatprep.subr.mxu0 0.0
    %2151 = vmatpush2.msra.mxu0 0.0
    %2152 = vmatprep.subr.mxu0 0.0
    %2153 = vmatpush2.msra.mxu0 0.0
    %2154 = vmatprep.subr.mxu0 0.0
    %2155 = vmatpush2.msra.mxu0 0.0
    %2156 = vmatprep.subr.mxu0 0.0
    %2157 = vmatpush2.msra.mxu0 0.0
    %2158 = vmatprep.subr.mxu0 0.0
    %2159 = vmatpush2.msra.mxu0 0.0
    %2160 = vmatprep.subr.mxu0 0.0
    %2161 = vmatpush2.msra.mxu0 0.0
    %2162 = vmatprep.subr.mxu0 0.0
    %2163 = vmatpush2.msra.mxu0 0.0
    %2164 = vmatprep.subr.mxu0 0.0
    %2165 = vmatpush2.msra.mxu0 0.0
    %2166 = vmatprep.subr.mxu0 0.0
    %2167 = vmatpush2.msra.mxu0 0.0
    %2168 = vmatprep.mubr.f32.mxu0 0.0
    %2169 = vmatmul.mubr.f32.gmra.mxu0 %v2099
    %v2170 = vpop.f32.mrf.mxu0
    %v2171 = vadd.f32 %v2096, %v2170
    %v2172 = vpop.f32.mrf.mxu0
    %2173 = vmatprep.mubr.f32.mxu0 0.0
    %2174 = vmatmul.mubr.f32.gmra.mxu0 %v2102
    %v2175 = vpop.f32.mrf.mxu0
    %v2176 = vadd.f32 %v2096, %v2175
    %v2177 = vpop.f32.mrf.mxu0
    %2178 = vdwg.mxu0
    %2179 = vst.msk [vmem:[#allocation2] sm:$0xff] %vm168, %v2171
    %2180 = vst.msk [vmem:[#allocation2 + $0x8] sm:$0xff] %vm168, %v2176
    // Predicated region
    $region114: #{temporal_mae_forward.1} parent=1 // pred_check
      _
    $region115: #{temporal_mae_forward.1} parent=1 // pred_check_branch
      %2182 = sbr.rel (0) target = $region117
    $region116: #{temporal_mae_forward.1} parent=1 // pred_region
      %s2184 = ssub.s32 256, 256
      %2185 = vsyncadd [#allocation3], %s2184
      %s2186 = sshll.u32 [#allocation2], 4
      %s2187 = int_to_ptr.vmem [resolvable:$true] %s2186
      %2192 = dma.vmem_to_hbm [thread:$0]  %s2187, 256, %s28, [#allocation3], 128, 128, 8
    $region117: #{temporal_mae_forward.1} parent=1 // pred_fallthru
      _
    // Predicated region
    $region118: #{temporal_mae_forward.1} parent=1 // pred_check
      _
    $region119: #{temporal_mae_forward.1} parent=1 // pred_check_branch
      %2194 = sbr.rel (0) target = $region121
    $region120: #{temporal_mae_forward.1} parent=1 // pred_region
      %2195 = dma.done [#allocation3], 256
    $region121: #{temporal_mae_forward.1} parent=1 // pred_fallthru
      _
    %2196 = vsyncpa [#allocation3], 1

</llo_original>
